<compile_context>
chip_gen: v7x
topology: tpu7x:2x2x1
jax: 0.10.0
libtpu: 0.0.40
codegen_flags: <defaults>
</compile_context>

<pallas_src>
import functools
import math

import numpy as np
import jax
import jax.numpy as jnp
from jax.experimental import pallas as pl
from jax.experimental.pallas import tpu as pltpu

LN_EPS = 1e-5                      # nn.LayerNorm default
_INV_SQRT2 = 0.7071067811865476    # for exact-erf GELU (nn.GELU default)


def _layernorm(z, g, b):
    mu = jnp.mean(z, axis=-1, keepdims=True)
    var = jnp.mean(jnp.square(z - mu), axis=-1, keepdims=True)
    return (z - mu) * jax.lax.rsqrt(var + LN_EPS) * g + b


# ---------------------------------------------------------------------------
# fused transformer-block kernel (one grid step == one MHA batch element)
# ---------------------------------------------------------------------------
def _vit_block_kernel(x_ref, wqkv_ref, bqkv_ref, wo_ref, bo_ref,
                      ln1_g_ref, ln1_b_ref, w1_ref, b1_ref, w2_ref, b2_ref,
                      ln2_g_ref, ln2_b_ref, o_ref, *, num_heads):
    _, S, E = x_ref.shape
    H = num_heads
    D = E // H
    scale = 1.0 / math.sqrt(D)

    x = x_ref[0]                                                        # (S, E) f32
    x_bf = x.astype(jnp.bfloat16)                                       # MXU operand

    # ---- fused QKV projection: one lane-dense bf16 MXU matmul, f32 accumulation ----
    qkv = jnp.dot(x_bf, wqkv_ref[...], preferred_element_type=jnp.float32) + bqkv_ref[...]
    q = (qkv[:, :E] * scale).astype(jnp.bfloat16)                       # torch pre-scales q
    k = qkv[:, E:2 * E].astype(jnp.bfloat16)
    v = qkv[:, 2 * E:].astype(jnp.bfloat16)

    # ---- per-head attention; heads are D-wide lane slices of the (S, E) tiles ----
    # (at real sizes with D=64, process head pairs so slices stay 128-lane aligned)
    head_outs = []
    for h in range(H):                                                  # static unroll
        lo = h * D
        qh, kh, vh = q[:, lo:lo + D], k[:, lo:lo + D], v[:, lo:lo + D]  # (S, D) bf16
        s = jax.lax.dot_general(qh, kh, (((1,), (1,)), ((), ())),
                                preferred_element_type=jnp.float32)     # (S, S) = qh @ kh.T
        s = s - jnp.max(s, axis=-1, keepdims=True)
        p = jnp.exp(s)
        denom = jnp.sum(p, axis=-1, keepdims=True)
        r = pl.reciprocal(denom, approx=True)                           # EUP slot
        r = r * (2.0 - denom * r)                                       # one Newton refinement
        p = (p * r).astype(jnp.bfloat16)
        head_outs.append(jnp.dot(p, vh, preferred_element_type=jnp.float32))  # (S, D) f32

    # ---- single K=E out-projection (full-depth MXU matmul instead of H K=D matmuls) ----
    o_heads = jnp.concatenate(head_outs, axis=-1).astype(jnp.bfloat16)  # (S, E)
    attn = jnp.dot(o_heads, wo_ref[...], preferred_element_type=jnp.float32) + bo_ref[...]

    # ---- residual + LayerNorm 1 (f32) ----
    x1 = _layernorm(x + attn, ln1_g_ref[...], ln1_b_ref[...])

    # ---- MLP: Linear -> exact-erf GELU -> Linear (bf16 operands, f32 accumulation) ----
    hdn = jnp.dot(x1.astype(jnp.bfloat16), w1_ref[...],
                  preferred_element_type=jnp.float32) + b1_ref[...]
    hdn = 0.5 * hdn * (1.0 + jax.lax.erf(hdn * _INV_SQRT2))
    mlp = jnp.dot(hdn.astype(jnp.bfloat16), w2_ref[...],
                  preferred_element_type=jnp.float32) + b2_ref[...]

    # ---- residual + LayerNorm 2 -> the single HBM store ----
    o_ref[0] = _layernorm(x1 + mlp, ln2_g_ref[...], ln2_b_ref[...])


_PARAM_ORDER = ('wqkv', 'bqkv', 'wo', 'bo', 'ln1_g', 'ln1_b',
                'w1', 'b1', 'w2', 'b2', 'ln2_g', 'ln2_b')
_BF16_WEIGHTS = ('wqkv', 'wo', 'w1', 'w2')


def vit_block_forward_batch_major(xb, params, num_heads):
    """Core fused block. xb: (batch N, seq S, embed E) batch-major activations."""
    N, S, E = xb.shape
    M = params['w1'].shape[1]
    H = num_heads
    D = E // H
    assert E % H == 0, "embed_dim must be divisible by num_heads"
    assert S % 8 == 0, "seq_len must be a multiple of 8 (f32 sublane tile); pad + key-mask otherwise"

    # bf16 MXU-operand weights (halves resident VMEM); biases / LN params stay f32.
    p = dict(params)
    for name in _BF16_WEIGHTS:
        p[name] = params[name].astype(jnp.bfloat16)
    weights = [p[key] for key in _PARAM_ORDER]

    # Advisory cost estimate for XLA's scheduler.
    flops = N * (6 * S * E * E          # QKV projection
                 + 4 * H * S * S * D    # scores + probs@V
                 + 2 * S * E * E        # out projection
                 + 4 * S * E * M)       # MLP fc1 + fc2
    transcendentals = N * (H * S * S + S * M)          # softmax exp + GELU erf
    bytes_accessed = (2 * N * S * E * 4
                      + sum(int(np.prod(w.shape)) * w.dtype.itemsize for w in weights))

    def weight_spec(w):
        # Constant index_map -> DMA'd into VMEM once and resident across grid steps.
        # Single-buffered: double-buffering an unchanging block only burns VMEM (v7x: 64 MiB).
        return pl.BlockSpec(w.shape, lambda b: (0, 0), pipeline_mode=pl.Buffered(1))

    out = pl.pallas_call(
        functools.partial(_vit_block_kernel, num_heads=num_heads),
        grid=(N,),
        in_specs=[pl.BlockSpec((1, S, E), lambda b: (b, 0, 0))] +          # per-batch activations
                 [weight_spec(w) for w in weights],
        out_specs=pl.BlockSpec((1, S, E), lambda b: (b, 0, 0)),
        out_shape=jax.ShapeDtypeStruct((N, S, E), jnp.float32),
        compiler_params=pltpu.CompilerParams(
            dimension_semantics=("parallel",),
            vmem_limit_bytes=32 * 1024 * 1024,   # > v5e's 16 MiB default, < v7x's 64 MiB physical
        ),
        cost_estimate=pl.CostEstimate(flops=flops, transcendentals=transcendentals,
                                      bytes_accessed=bytes_accessed),
    )(xb, *weights)
    return out


def vit_block_forward(x, params, num_heads):
    """Torch-layout adapter: x is (seq S, batch N, embed E) as nn.MultiheadAttention
    (batch_first=False) expects.  In a full MAE stack, transpose once at the top and keep
    activations batch-major end-to-end (vit_block_forward_batch_major) so these two HBM
    passes amortize across all blocks instead of repeating per block."""
    out = vit_block_forward_batch_major(jnp.transpose(x, (1, 0, 2)), params, num_heads)
    return jnp.transpose(out, (1, 0, 2))


# ---------------------------------------------------------------------------
# pure-JAX f32 reference (mirrors torch eval-mode semantics) for the correctness check
# ---------------------------------------------------------------------------
def reference_block(x, params, num_heads):
    S, N, E = x.shape
    H = num_heads
    D = E // H
    x2 = x.reshape(S * N, E)
    qkv = x2 @ params['wqkv'] + params['bqkv']
    q = (qkv[:, :E] / math.sqrt(D)).reshape(S, N, H, D)
    k = qkv[:, E:2 * E].reshape(S, N, H, D)
    v = qkv[:, 2 * E:].reshape(S, N, H, D)
    s = jnp.einsum('snhd,tnhd->nhst', q, k)
    a = jax.nn.softmax(s, axis=-1)
    o = jnp.einsum('nhst,tnhd->snhd', a, v).reshape(S * N, E)
    o = (o @ params['wo'] + params['bo']).reshape(S, N, E)

    def ln(z, g, b):
        mu = z.mean(-1, keepdims=True)
        var = jnp.square(z - mu).mean(-1, keepdims=True)
        return (z - mu) * jax.lax.rsqrt(var + LN_EPS) * g + b

    x1 = ln(x + o, params['ln1_g'], params['ln1_b'])
    h = x1.reshape(S * N, E) @ params['w1'] + params['b1']
    h = 0.5 * h * (1.0 + jax.lax.erf(h * _INV_SQRT2))
    m = (h @ params['w2'] + params['b2']).reshape(S, N, E)
    return ln(x1 + m, params['ln2_g'], params['ln2_b'])


# ---------------------------------------------------------------------------
# deterministic parameter init (shapes follow the module's __init__)
# ---------------------------------------------------------------------------
def init_params(key, embed_dim, mlp_dim):
    E, M = embed_dim, mlp_dim
    ks = jax.random.split(key, 12)

    def nrm(k, shape, scl=0.1):
        return scl * jax.random.normal(k, shape, jnp.float32)

    return dict(
        wqkv=nrm(ks[0], (E, 3 * E)), bqkv=nrm(ks[1], (1, 3 * E)),   # MHA in_proj (pre-transposed)
        wo=nrm(ks[2], (E, E)),       bo=nrm(ks[3], (1, E)),         # MHA out_proj
        ln1_g=1.0 + nrm(ks[4], (1, E), 0.05), ln1_b=nrm(ks[5], (1, E), 0.05),
        w1=nrm(ks[6], (E, M)),       b1=nrm(ks[7], (1, M)),         # MLP fc1
        w2=nrm(ks[8], (M, E)),       b2=nrm(ks[9], (1, E)),         # MLP fc2
        ln2_g=1.0 + nrm(ks[10], (1, E), 0.05), ln2_b=nrm(ks[11], (1, E), 0.05),
    )


if __name__ == "__main__":
    SEQ, BATCH, EMBED, HEADS, MLP = 16, 2, 32, 4, 64

    key = jax.random.PRNGKey(0)
    kp, kx = jax.random.split(key)
    params = init_params(kp, EMBED, MLP)
    x = jax.random.normal(kx, (SEQ, BATCH, EMBED), jnp.float32)

    out = jax.block_until_ready(vit_block_forward(x, params, HEADS))
    ref = jax.block_until_ready(reference_block(x, params, HEADS))

    assert out.shape == (SEQ, BATCH, EMBED)
    # bf16 MXU operands (f32 accumulation) vs. an all-f32 reference -> tolerance widened per review.
    if not np.allclose(np.asarray(out), np.asarray(ref), rtol=5e-2, atol=5e-2):
        err = float(np.max(np.abs(np.asarray(out) - np.asarray(ref))))
        raise AssertionError(f"Pallas output does not match reference (max abs err {err:.3e})")
    print("KERNEL_OK")
</pallas_src>

<mosaic_0001>
module attributes {stable_mosaic.version = 11 : i64} {
  func.func @_vit_block_kernel(%arg0: i32, %arg1: memref<1x16x32xf32, #tpu.memory_space<vmem>>, %arg2: memref<32x96xbf16, #tpu.memory_space<vmem>>, %arg3: memref<1x96xf32, #tpu.memory_space<vmem>>, %arg4: memref<32x32xbf16, #tpu.memory_space<vmem>>, %arg5: memref<1x32xf32, #tpu.memory_space<vmem>>, %arg6: memref<1x32xf32, #tpu.memory_space<vmem>>, %arg7: memref<1x32xf32, #tpu.memory_space<vmem>>, %arg8: memref<32x64xbf16, #tpu.memory_space<vmem>>, %arg9: memref<1x64xf32, #tpu.memory_space<vmem>>, %arg10: memref<64x32xbf16, #tpu.memory_space<vmem>>, %arg11: memref<1x32xf32, #tpu.memory_space<vmem>>, %arg12: memref<1x32xf32, #tpu.memory_space<vmem>>, %arg13: memref<1x32xf32, #tpu.memory_space<vmem>>, %arg14: memref<1x16x32xf32, #tpu.memory_space<vmem>>) attributes {dimension_semantics = [#tpu.dimension_semantics<parallel>], iteration_bounds = array<i64: 2>, scalar_prefetch = 0 : i64, scratch_operands = 0 : i64, tpu.core_type = #tpu.core_type<tc>, window_params = [{transform_indices = @transform_0, window_bounds = array<i64: 1, 16, 32>}, {pipeline_mode = #tpu.pipeline_mode<synchronous>, transform_indices = @transform_1, window_bounds = array<i64: 32, 96>}, {pipeline_mode = #tpu.pipeline_mode<synchronous>, transform_indices = @transform_2, window_bounds = array<i64: 1, 96>}, {pipeline_mode = #tpu.pipeline_mode<synchronous>, transform_indices = @transform_3, window_bounds = array<i64: 32, 32>}, {pipeline_mode = #tpu.pipeline_mode<synchronous>, transform_indices = @transform_4, window_bounds = array<i64: 1, 32>}, {pipeline_mode = #tpu.pipeline_mode<synchronous>, transform_indices = @transform_5, window_bounds = array<i64: 1, 32>}, {pipeline_mode = #tpu.pipeline_mode<synchronous>, transform_indices = @transform_6, window_bounds = array<i64: 1, 32>}, {pipeline_mode = #tpu.pipeline_mode<synchronous>, transform_indices = @transform_7, window_bounds = array<i64: 32, 64>}, {pipeline_mode = #tpu.pipeline_mode<synchronous>, transform_indices = @transform_8, window_bounds = array<i64: 1, 64>}, {pipeline_mode = #tpu.pipeline_mode<synchronous>, transform_indices = @transform_9, window_bounds = array<i64: 64, 32>}, {pipeline_mode = #tpu.pipeline_mode<synchronous>, transform_indices = @transform_10, window_bounds = array<i64: 1, 32>}, {pipeline_mode = #tpu.pipeline_mode<synchronous>, transform_indices = @transform_11, window_bounds = array<i64: 1, 32>}, {pipeline_mode = #tpu.pipeline_mode<synchronous>, transform_indices = @transform_12, window_bounds = array<i64: 1, 32>}, {transform_indices = @transform_13, window_bounds = array<i64: 1, 16, 32>}]} {
    %c0 = arith.constant 0 : index
    %c0_0 = arith.constant 0 : index
    %c0_1 = arith.constant 0 : index
    %0 = vector.load %arg1[%c0, %c0_0, %c0_1] : memref<1x16x32xf32, #tpu.memory_space<vmem>>, vector<1x16x32xf32>
    %1 = vector.shape_cast %0 : vector<1x16x32xf32> to vector<16x32xf32>
    %2 = arith.truncf %1 : vector<16x32xf32> to vector<16x32xbf16>
    %c0_2 = arith.constant 0 : index
    %c0_3 = arith.constant 0 : index
    %3 = vector.load %arg2[%c0_2, %c0_3] : memref<32x96xbf16, #tpu.memory_space<vmem>>, vector<32x96xbf16>
    %cst = arith.constant dense<0.000000e+00> : vector<16x96xf32>
    %4 = tpu.matmul %2, %3, %cst {dimension_numbers = #tpu.dot_dimension_numbers<[1], [0], [0], [1], [0, 0, 1, 1], [], []>} : vector<16x32xbf16>, vector<32x96xbf16>, vector<16x96xf32> -> vector<16x96xf32>
    %c0_4 = arith.constant 0 : index
    %c0_5 = arith.constant 0 : index
    %5 = vector.load %arg3[%c0_4, %c0_5] : memref<1x96xf32, #tpu.memory_space<vmem>>, vector<1x96xf32>
    %6 = vector.broadcast %5 : vector<1x96xf32> to vector<16x96xf32>
    %7 = arith.addf %4, %6 : vector<16x96xf32>
    %8 = vector.extract_strided_slice %7 {offsets = [0, 0], sizes = [16, 32], strides = [1, 1]} : vector<16x96xf32> to vector<16x32xf32>
    %cst_6 = arith.constant 0.353553385 : f32
    %9 = vector.broadcast %cst_6 : f32 to vector<16x32xf32>
    %10 = arith.mulf %8, %9 : vector<16x32xf32>
    %11 = arith.truncf %10 : vector<16x32xf32> to vector<16x32xbf16>
    %12 = vector.extract_strided_slice %7 {offsets = [0, 32], sizes = [16, 32], strides = [1, 1]} : vector<16x96xf32> to vector<16x32xf32>
    %13 = arith.truncf %12 : vector<16x32xf32> to vector<16x32xbf16>
    %14 = vector.extract_strided_slice %7 {offsets = [0, 64], sizes = [16, 32], strides = [1, 1]} : vector<16x96xf32> to vector<16x32xf32>
    %15 = arith.truncf %14 : vector<16x32xf32> to vector<16x32xbf16>
    %16 = vector.extract_strided_slice %11 {offsets = [0, 0], sizes = [16, 8], strides = [1, 1]} : vector<16x32xbf16> to vector<16x8xbf16>
    %17 = vector.extract_strided_slice %13 {offsets = [0, 0], sizes = [16, 8], strides = [1, 1]} : vector<16x32xbf16> to vector<16x8xbf16>
    %18 = vector.extract_strided_slice %15 {offsets = [0, 0], sizes = [16, 8], strides = [1, 1]} : vector<16x32xbf16> to vector<16x8xbf16>
    %cst_7 = arith.constant dense<0.000000e+00> : vector<16x16xf32>
    %19 = tpu.matmul %16, %17, %cst_7 {dimension_numbers = #tpu.dot_dimension_numbers<[1], [1], [0], [0], [0, 0, 1, 0], [], []>} : vector<16x8xbf16>, vector<16x8xbf16>, vector<16x16xf32> -> vector<16x16xf32>
    %cst_8 = arith.constant dense<0xFF800000> : vector<16xf32>
    %20 = vector.multi_reduction <maximumf>, %19, %cst_8 [1] : vector<16x16xf32> to vector<16xf32>
    %21 = vector.shape_cast %20 : vector<16xf32> to vector<16x1xf32>
    %22 = vector.broadcast %21 : vector<16x1xf32> to vector<16x16xf32>
    %23 = arith.subf %19, %22 : vector<16x16xf32>
    %24 = math.exp %23 : vector<16x16xf32>
    %cst_9 = arith.constant dense<0.000000e+00> : vector<16xf32>
    %25 = vector.multi_reduction <add>, %24, %cst_9 [1] : vector<16x16xf32> to vector<16xf32>
    %26 = vector.shape_cast %25 : vector<16xf32> to vector<16x1xf32>
    %27 = tpu.reciprocal %26 {approx = true} : vector<16x1xf32> -> vector<16x1xf32>
    %28 = arith.mulf %26, %27 : vector<16x1xf32>
    %cst_10 = arith.constant 2.000000e+00 : f32
    %29 = vector.broadcast %cst_10 : f32 to vector<16x1xf32>
    %30 = arith.subf %29, %28 : vector<16x1xf32>
    %31 = arith.mulf %27, %30 : vector<16x1xf32>
    %32 = vector.broadcast %31 : vector<16x1xf32> to vector<16x16xf32>
    %33 = arith.mulf %24, %32 : vector<16x16xf32>
    %34 = arith.truncf %33 : vector<16x16xf32> to vector<16x16xbf16>
    %cst_11 = arith.constant dense<0.000000e+00> : vector<16x8xf32>
    %35 = tpu.matmul %34, %18, %cst_11 {dimension_numbers = #tpu.dot_dimension_numbers<[1], [0], [0], [1], [0, 0, 1, 1], [], []>} : vector<16x16xbf16>, vector<16x8xbf16>, vector<16x8xf32> -> vector<16x8xf32>
    %36 = vector.extract_strided_slice %11 {offsets = [0, 8], sizes = [16, 8], strides = [1, 1]} : vector<16x32xbf16> to vector<16x8xbf16>
    %37 = vector.extract_strided_slice %13 {offsets = [0, 8], sizes = [16, 8], strides = [1, 1]} : vector<16x32xbf16> to vector<16x8xbf16>
    %38 = vector.extract_strided_slice %15 {offsets = [0, 8], sizes = [16, 8], strides = [1, 1]} : vector<16x32xbf16> to vector<16x8xbf16>
    %cst_12 = arith.constant dense<0.000000e+00> : vector<16x16xf32>
    %39 = tpu.matmul %36, %37, %cst_12 {dimension_numbers = #tpu.dot_dimension_numbers<[1], [1], [0], [0], [0, 0, 1, 0], [], []>} : vector<16x8xbf16>, vector<16x8xbf16>, vector<16x16xf32> -> vector<16x16xf32>
    %cst_13 = arith.constant dense<0xFF800000> : vector<16xf32>
    %40 = vector.multi_reduction <maximumf>, %39, %cst_13 [1] : vector<16x16xf32> to vector<16xf32>
    %41 = vector.shape_cast %40 : vector<16xf32> to vector<16x1xf32>
    %42 = vector.broadcast %41 : vector<16x1xf32> to vector<16x16xf32>
    %43 = arith.subf %39, %42 : vector<16x16xf32>
    %44 = math.exp %43 : vector<16x16xf32>
    %cst_14 = arith.constant dense<0.000000e+00> : vector<16xf32>
    %45 = vector.multi_reduction <add>, %44, %cst_14 [1] : vector<16x16xf32> to vector<16xf32>
    %46 = vector.shape_cast %45 : vector<16xf32> to vector<16x1xf32>
    %47 = tpu.reciprocal %46 {approx = true} : vector<16x1xf32> -> vector<16x1xf32>
    %48 = arith.mulf %46, %47 : vector<16x1xf32>
    %cst_15 = arith.constant 2.000000e+00 : f32
    %49 = vector.broadcast %cst_15 : f32 to vector<16x1xf32>
    %50 = arith.subf %49, %48 : vector<16x1xf32>
    %51 = arith.mulf %47, %50 : vector<16x1xf32>
    %52 = vector.broadcast %51 : vector<16x1xf32> to vector<16x16xf32>
    %53 = arith.mulf %44, %52 : vector<16x16xf32>
    %54 = arith.truncf %53 : vector<16x16xf32> to vector<16x16xbf16>
    %cst_16 = arith.constant dense<0.000000e+00> : vector<16x8xf32>
    %55 = tpu.matmul %54, %38, %cst_16 {dimension_numbers = #tpu.dot_dimension_numbers<[1], [0], [0], [1], [0, 0, 1, 1], [], []>} : vector<16x16xbf16>, vector<16x8xbf16>, vector<16x8xf32> -> vector<16x8xf32>
    %56 = vector.extract_strided_slice %11 {offsets = [0, 16], sizes = [16, 8], strides = [1, 1]} : vector<16x32xbf16> to vector<16x8xbf16>
    %57 = vector.extract_strided_slice %13 {offsets = [0, 16], sizes = [16, 8], strides = [1, 1]} : vector<16x32xbf16> to vector<16x8xbf16>
    %58 = vector.extract_strided_slice %15 {offsets = [0, 16], sizes = [16, 8], strides = [1, 1]} : vector<16x32xbf16> to vector<16x8xbf16>
    %cst_17 = arith.constant dense<0.000000e+00> : vector<16x16xf32>
    %59 = tpu.matmul %56, %57, %cst_17 {dimension_numbers = #tpu.dot_dimension_numbers<[1], [1], [0], [0], [0, 0, 1, 0], [], []>} : vector<16x8xbf16>, vector<16x8xbf16>, vector<16x16xf32> -> vector<16x16xf32>
    %cst_18 = arith.constant dense<0xFF800000> : vector<16xf32>
    %60 = vector.multi_reduction <maximumf>, %59, %cst_18 [1] : vector<16x16xf32> to vector<16xf32>
    %61 = vector.shape_cast %60 : vector<16xf32> to vector<16x1xf32>
    %62 = vector.broadcast %61 : vector<16x1xf32> to vector<16x16xf32>
    %63 = arith.subf %59, %62 : vector<16x16xf32>
    %64 = math.exp %63 : vector<16x16xf32>
    %cst_19 = arith.constant dense<0.000000e+00> : vector<16xf32>
    %65 = vector.multi_reduction <add>, %64, %cst_19 [1] : vector<16x16xf32> to vector<16xf32>
    %66 = vector.shape_cast %65 : vector<16xf32> to vector<16x1xf32>
    %67 = tpu.reciprocal %66 {approx = true} : vector<16x1xf32> -> vector<16x1xf32>
    %68 = arith.mulf %66, %67 : vector<16x1xf32>
    %cst_20 = arith.constant 2.000000e+00 : f32
    %69 = vector.broadcast %cst_20 : f32 to vector<16x1xf32>
    %70 = arith.subf %69, %68 : vector<16x1xf32>
    %71 = arith.mulf %67, %70 : vector<16x1xf32>
    %72 = vector.broadcast %71 : vector<16x1xf32> to vector<16x16xf32>
    %73 = arith.mulf %64, %72 : vector<16x16xf32>
    %74 = arith.truncf %73 : vector<16x16xf32> to vector<16x16xbf16>
    %cst_21 = arith.constant dense<0.000000e+00> : vector<16x8xf32>
    %75 = tpu.matmul %74, %58, %cst_21 {dimension_numbers = #tpu.dot_dimension_numbers<[1], [0], [0], [1], [0, 0, 1, 1], [], []>} : vector<16x16xbf16>, vector<16x8xbf16>, vector<16x8xf32> -> vector<16x8xf32>
    %76 = vector.extract_strided_slice %11 {offsets = [0, 24], sizes = [16, 8], strides = [1, 1]} : vector<16x32xbf16> to vector<16x8xbf16>
    %77 = vector.extract_strided_slice %13 {offsets = [0, 24], sizes = [16, 8], strides = [1, 1]} : vector<16x32xbf16> to vector<16x8xbf16>
    %78 = vector.extract_strided_slice %15 {offsets = [0, 24], sizes = [16, 8], strides = [1, 1]} : vector<16x32xbf16> to vector<16x8xbf16>
    %cst_22 = arith.constant dense<0.000000e+00> : vector<16x16xf32>
    %79 = tpu.matmul %76, %77, %cst_22 {dimension_numbers = #tpu.dot_dimension_numbers<[1], [1], [0], [0], [0, 0, 1, 0], [], []>} : vector<16x8xbf16>, vector<16x8xbf16>, vector<16x16xf32> -> vector<16x16xf32>
    %cst_23 = arith.constant dense<0xFF800000> : vector<16xf32>
    %80 = vector.multi_reduction <maximumf>, %79, %cst_23 [1] : vector<16x16xf32> to vector<16xf32>
    %81 = vector.shape_cast %80 : vector<16xf32> to vector<16x1xf32>
    %82 = vector.broadcast %81 : vector<16x1xf32> to vector<16x16xf32>
    %83 = arith.subf %79, %82 : vector<16x16xf32>
    %84 = math.exp %83 : vector<16x16xf32>
    %cst_24 = arith.constant dense<0.000000e+00> : vector<16xf32>
    %85 = vector.multi_reduction <add>, %84, %cst_24 [1] : vector<16x16xf32> to vector<16xf32>
    %86 = vector.shape_cast %85 : vector<16xf32> to vector<16x1xf32>
    %87 = tpu.reciprocal %86 {approx = true} : vector<16x1xf32> -> vector<16x1xf32>
    %88 = arith.mulf %86, %87 : vector<16x1xf32>
    %cst_25 = arith.constant 2.000000e+00 : f32
    %89 = vector.broadcast %cst_25 : f32 to vector<16x1xf32>
    %90 = arith.subf %89, %88 : vector<16x1xf32>
    %91 = arith.mulf %87, %90 : vector<16x1xf32>
    %92 = vector.broadcast %91 : vector<16x1xf32> to vector<16x16xf32>
    %93 = arith.mulf %84, %92 : vector<16x16xf32>
    %94 = arith.truncf %93 : vector<16x16xf32> to vector<16x16xbf16>
    %cst_26 = arith.constant dense<0.000000e+00> : vector<16x8xf32>
    %95 = tpu.matmul %94, %78, %cst_26 {dimension_numbers = #tpu.dot_dimension_numbers<[1], [0], [0], [1], [0, 0, 1, 1], [], []>} : vector<16x16xbf16>, vector<16x8xbf16>, vector<16x8xf32> -> vector<16x8xf32>
    %96 = tpu.concatenate %35, %55, %75, %95 in 1 : vector<16x8xf32>, vector<16x8xf32>, vector<16x8xf32>, vector<16x8xf32> -> vector<16x32xf32>
    %97 = arith.truncf %96 : vector<16x32xf32> to vector<16x32xbf16>
    %c0_27 = arith.constant 0 : index
    %c0_28 = arith.constant 0 : index
    %98 = vector.load %arg4[%c0_27, %c0_28] : memref<32x32xbf16, #tpu.memory_space<vmem>>, vector<32x32xbf16>
    %cst_29 = arith.constant dense<0.000000e+00> : vector<16x32xf32>
    %99 = tpu.matmul %97, %98, %cst_29 {dimension_numbers = #tpu.dot_dimension_numbers<[1], [0], [0], [1], [0, 0, 1, 1], [], []>} : vector<16x32xbf16>, vector<32x32xbf16>, vector<16x32xf32> -> vector<16x32xf32>
    %c0_30 = arith.constant 0 : index
    %c0_31 = arith.constant 0 : index
    %100 = vector.load %arg5[%c0_30, %c0_31] : memref<1x32xf32, #tpu.memory_space<vmem>>, vector<1x32xf32>
    %101 = vector.broadcast %100 : vector<1x32xf32> to vector<16x32xf32>
    %102 = arith.addf %99, %101 : vector<16x32xf32>
    %103 = arith.addf %1, %102 : vector<16x32xf32>
    %c0_32 = arith.constant 0 : index
    %c0_33 = arith.constant 0 : index
    %104 = vector.load %arg6[%c0_32, %c0_33] : memref<1x32xf32, #tpu.memory_space<vmem>>, vector<1x32xf32>
    %c0_34 = arith.constant 0 : index
    %c0_35 = arith.constant 0 : index
    %105 = vector.load %arg7[%c0_34, %c0_35] : memref<1x32xf32, #tpu.memory_space<vmem>>, vector<1x32xf32>
    %cst_36 = arith.constant dense<0.000000e+00> : vector<16xf32>
    %106 = vector.multi_reduction <add>, %103, %cst_36 [1] : vector<16x32xf32> to vector<16xf32>
    %107 = vector.shape_cast %106 : vector<16xf32> to vector<16x1xf32>
    %cst_37 = arith.constant 3.200000e+01 : f32
    %108 = vector.broadcast %cst_37 : f32 to vector<16x1xf32>
    %109 = arith.divf %107, %108 : vector<16x1xf32>
    %110 = vector.broadcast %109 : vector<16x1xf32> to vector<16x32xf32>
    %111 = arith.subf %103, %110 : vector<16x32xf32>
    %112 = arith.mulf %111, %111 : vector<16x32xf32>
    %cst_38 = arith.constant dense<0.000000e+00> : vector<16xf32>
    %113 = vector.multi_reduction <add>, %112, %cst_38 [1] : vector<16x32xf32> to vector<16xf32>
    %114 = vector.shape_cast %113 : vector<16xf32> to vector<16x1xf32>
    %cst_39 = arith.constant 3.200000e+01 : f32
    %115 = vector.broadcast %cst_39 : f32 to vector<16x1xf32>
    %116 = arith.divf %114, %115 : vector<16x1xf32>
    %117 = vector.broadcast %109 : vector<16x1xf32> to vector<16x32xf32>
    %118 = arith.subf %103, %117 : vector<16x32xf32>
    %cst_40 = arith.constant 9.99999974E-6 : f32
    %119 = vector.broadcast %cst_40 : f32 to vector<16x1xf32>
    %120 = arith.addf %116, %119 : vector<16x1xf32>
    %121 = math.rsqrt %120 : vector<16x1xf32>
    %122 = vector.broadcast %121 : vector<16x1xf32> to vector<16x32xf32>
    %123 = arith.mulf %118, %122 : vector<16x32xf32>
    %124 = vector.broadcast %104 : vector<1x32xf32> to vector<16x32xf32>
    %125 = arith.mulf %123, %124 : vector<16x32xf32>
    %126 = vector.broadcast %105 : vector<1x32xf32> to vector<16x32xf32>
    %127 = arith.addf %125, %126 : vector<16x32xf32>
    %128 = arith.truncf %127 : vector<16x32xf32> to vector<16x32xbf16>
    %c0_41 = arith.constant 0 : index
    %c0_42 = arith.constant 0 : index
    %129 = vector.load %arg8[%c0_41, %c0_42] : memref<32x64xbf16, #tpu.memory_space<vmem>>, vector<32x64xbf16>
    %cst_43 = arith.constant dense<0.000000e+00> : vector<16x64xf32>
    %130 = tpu.matmul %128, %129, %cst_43 {dimension_numbers = #tpu.dot_dimension_numbers<[1], [0], [0], [1], [0, 0, 1, 1], [], []>} : vector<16x32xbf16>, vector<32x64xbf16>, vector<16x64xf32> -> vector<16x64xf32>
    %c0_44 = arith.constant 0 : index
    %c0_45 = arith.constant 0 : index
    %131 = vector.load %arg9[%c0_44, %c0_45] : memref<1x64xf32, #tpu.memory_space<vmem>>, vector<1x64xf32>
    %132 = vector.broadcast %131 : vector<1x64xf32> to vector<16x64xf32>
    %133 = arith.addf %130, %132 : vector<16x64xf32>
    %cst_46 = arith.constant 5.000000e-01 : f32
    %134 = vector.broadcast %cst_46 : f32 to vector<16x64xf32>
    %135 = arith.mulf %134, %133 : vector<16x64xf32>
    %cst_47 = arith.constant 0.707106769 : f32
    %136 = vector.broadcast %cst_47 : f32 to vector<16x64xf32>
    %137 = arith.mulf %133, %136 : vector<16x64xf32>
    %138 = math.erf %137 : vector<16x64xf32>
    %cst_48 = arith.constant 1.000000e+00 : f32
    %139 = vector.broadcast %cst_48 : f32 to vector<16x64xf32>
    %140 = arith.addf %139, %138 : vector<16x64xf32>
    %141 = arith.mulf %135, %140 : vector<16x64xf32>
    %142 = arith.truncf %141 : vector<16x64xf32> to vector<16x64xbf16>
    %c0_49 = arith.constant 0 : index
    %c0_50 = arith.constant 0 : index
    %143 = vector.load %arg10[%c0_49, %c0_50] : memref<64x32xbf16, #tpu.memory_space<vmem>>, vector<64x32xbf16>
    %cst_51 = arith.constant dense<0.000000e+00> : vector<16x32xf32>
    %144 = tpu.matmul %142, %143, %cst_51 {dimension_numbers = #tpu.dot_dimension_numbers<[1], [0], [0], [1], [0, 0, 1, 1], [], []>} : vector<16x64xbf16>, vector<64x32xbf16>, vector<16x32xf32> -> vector<16x32xf32>
    %c0_52 = arith.constant 0 : index
    %c0_53 = arith.constant 0 : index
    %145 = vector.load %arg11[%c0_52, %c0_53] : memref<1x32xf32, #tpu.memory_space<vmem>>, vector<1x32xf32>
    %146 = vector.broadcast %145 : vector<1x32xf32> to vector<16x32xf32>
    %147 = arith.addf %144, %146 : vector<16x32xf32>
    %148 = arith.addf %127, %147 : vector<16x32xf32>
    %c0_54 = arith.constant 0 : index
    %c0_55 = arith.constant 0 : index
    %149 = vector.load %arg12[%c0_54, %c0_55] : memref<1x32xf32, #tpu.memory_space<vmem>>, vector<1x32xf32>
    %c0_56 = arith.constant 0 : index
    %c0_57 = arith.constant 0 : index
    %150 = vector.load %arg13[%c0_56, %c0_57] : memref<1x32xf32, #tpu.memory_space<vmem>>, vector<1x32xf32>
    %cst_58 = arith.constant dense<0.000000e+00> : vector<16xf32>
    %151 = vector.multi_reduction <add>, %148, %cst_58 [1] : vector<16x32xf32> to vector<16xf32>
    %152 = vector.shape_cast %151 : vector<16xf32> to vector<16x1xf32>
    %cst_59 = arith.constant 3.200000e+01 : f32
    %153 = vector.broadcast %cst_59 : f32 to vector<16x1xf32>
    %154 = arith.divf %152, %153 : vector<16x1xf32>
    %155 = vector.broadcast %154 : vector<16x1xf32> to vector<16x32xf32>
    %156 = arith.subf %148, %155 : vector<16x32xf32>
    %157 = arith.mulf %156, %156 : vector<16x32xf32>
    %cst_60 = arith.constant dense<0.000000e+00> : vector<16xf32>
    %158 = vector.multi_reduction <add>, %157, %cst_60 [1] : vector<16x32xf32> to vector<16xf32>
    %159 = vector.shape_cast %158 : vector<16xf32> to vector<16x1xf32>
    %cst_61 = arith.constant 3.200000e+01 : f32
    %160 = vector.broadcast %cst_61 : f32 to vector<16x1xf32>
    %161 = arith.divf %159, %160 : vector<16x1xf32>
    %162 = vector.broadcast %154 : vector<16x1xf32> to vector<16x32xf32>
    %163 = arith.subf %148, %162 : vector<16x32xf32>
    %cst_62 = arith.constant 9.99999974E-6 : f32
    %164 = vector.broadcast %cst_62 : f32 to vector<16x1xf32>
    %165 = arith.addf %161, %164 : vector<16x1xf32>
    %166 = math.rsqrt %165 : vector<16x1xf32>
    %167 = vector.broadcast %166 : vector<16x1xf32> to vector<16x32xf32>
    %168 = arith.mulf %163, %167 : vector<16x32xf32>
    %169 = vector.broadcast %149 : vector<1x32xf32> to vector<16x32xf32>
    %170 = arith.mulf %168, %169 : vector<16x32xf32>
    %171 = vector.broadcast %150 : vector<1x32xf32> to vector<16x32xf32>
    %172 = arith.addf %170, %171 : vector<16x32xf32>
    %c0_63 = arith.constant 0 : index
    %c0_64 = arith.constant 0 : index
    %c0_65 = arith.constant 0 : index
    %173 = vector.load %arg14[%c0_63, %c0_64, %c0_65] : memref<1x16x32xf32, #tpu.memory_space<vmem>>, vector<1x16x32xf32>
    %174 = vector.shape_cast %173 : vector<1x16x32xf32> to vector<16x32xf32>
    %175 = vector.shape_cast %172 : vector<16x32xf32> to vector<1x16x32xf32>
    tpu.vector_store %arg14[%c0_63, %c0_64, %c0_65], %175 {strides = array<i32>} : memref<1x16x32xf32, #tpu.memory_space<vmem>>, vector<1x16x32xf32>,
    return
  }
  func.func @transform_0(%arg0: i32) -> (i32, i32, i32) {
    %c0_i32 = arith.constant 0 : i32
    %c0_i32_0 = arith.constant 0 : i32
    %c0_i32_1 = arith.constant 0 : i32
    return %arg0, %c0_i32, %c0_i32_0 : i32, i32, i32
  }
  func.func @transform_1(%arg0: i32) -> (i32, i32) {
    %c0_i32 = arith.constant 0 : i32
    %c0_i32_0 = arith.constant 0 : i32
    %c0_i32_1 = arith.constant 0 : i32
    return %c0_i32, %c0_i32_0 : i32, i32
  }
  func.func @transform_2(%arg0: i32) -> (i32, i32) {
    %c0_i32 = arith.constant 0 : i32
    %c0_i32_0 = arith.constant 0 : i32
    %c0_i32_1 = arith.constant 0 : i32
    return %c0_i32, %c0_i32_0 : i32, i32
  }
  func.func @transform_3(%arg0: i32) -> (i32, i32) {
    %c0_i32 = arith.constant 0 : i32
    %c0_i32_0 = arith.constant 0 : i32
    %c0_i32_1 = arith.constant 0 : i32
    return %c0_i32, %c0_i32_0 : i32, i32
  }
  func.func @transform_4(%arg0: i32) -> (i32, i32) {
    %c0_i32 = arith.constant 0 : i32
    %c0_i32_0 = arith.constant 0 : i32
    %c0_i32_1 = arith.constant 0 : i32
    return %c0_i32, %c0_i32_0 : i32, i32
  }
  func.func @transform_5(%arg0: i32) -> (i32, i32) {
    %c0_i32 = arith.constant 0 : i32
    %c0_i32_0 = arith.constant 0 : i32
    %c0_i32_1 = arith.constant 0 : i32
    return %c0_i32, %c0_i32_0 : i32, i32
  }
  func.func @transform_6(%arg0: i32) -> (i32, i32) {
    %c0_i32 = arith.constant 0 : i32
    %c0_i32_0 = arith.constant 0 : i32
    %c0_i32_1 = arith.constant 0 : i32
    return %c0_i32, %c0_i32_0 : i32, i32
  }
  func.func @transform_7(%arg0: i32) -> (i32, i32) {
    %c0_i32 = arith.constant 0 : i32
    %c0_i32_0 = arith.constant 0 : i32
    %c0_i32_1 = arith.constant 0 : i32
    return %c0_i32, %c0_i32_0 : i32, i32
  }
  func.func @transform_8(%arg0: i32) -> (i32, i32) {
    %c0_i32 = arith.constant 0 : i32
    %c0_i32_0 = arith.constant 0 : i32
    %c0_i32_1 = arith.constant 0 : i32
    return %c0_i32, %c0_i32_0 : i32, i32
  }
  func.func @transform_9(%arg0: i32) -> (i32, i32) {
    %c0_i32 = arith.constant 0 : i32
    %c0_i32_0 = arith.constant 0 : i32
    %c0_i32_1 = arith.constant 0 : i32
    return %c0_i32, %c0_i32_0 : i32, i32
  }
  func.func @transform_10(%arg0: i32) -> (i32, i32) {
    %c0_i32 = arith.constant 0 : i32
    %c0_i32_0 = arith.constant 0 : i32
    %c0_i32_1 = arith.constant 0 : i32
    return %c0_i32, %c0_i32_0 : i32, i32
  }
  func.func @transform_11(%arg0: i32) -> (i32, i32) {
    %c0_i32 = arith.constant 0 : i32
    %c0_i32_0 = arith.constant 0 : i32
    %c0_i32_1 = arith.constant 0 : i32
    return %c0_i32, %c0_i32_0 : i32, i32
  }
  func.func @transform_12(%arg0: i32) -> (i32, i32) {
    %c0_i32 = arith.constant 0 : i32
    %c0_i32_0 = arith.constant 0 : i32
    %c0_i32_1 = arith.constant 0 : i32
    return %c0_i32, %c0_i32_0 : i32, i32
  }
  func.func @transform_13(%arg0: i32) -> (i32, i32, i32) {
    %c0_i32 = arith.constant 0 : i32
    %c0_i32_0 = arith.constant 0 : i32
    %c0_i32_1 = arith.constant 0 : i32
    return %arg0, %c0_i32, %c0_i32_0 : i32, i32, i32
  }
}

</mosaic_0001>

<llo_original>
// kernel: tpu_custom_call.1
$region0: #{tpu_custom_call.1}
  #allocation0 [shape = 'u32[]', space=smem, size = 0x4, offset = 0x4, fixed_abs, tag = 'smem constant byte address 0x4 - core index']
  #allocation1 [shape = 'u32[144,128]{1,0:T(1,128)}', space=vmem, size = 0x12000, scoped, tag = 'internal scratch']
  %s0 = inlined_call_operand.vmem [shape: f32[2,16,32], index: 0, kind: input, shape index: {}]
  %s1 = inlined_call_operand.vmem [shape: bf16[32,96], index: 1, kind: input, shape index: {}]
  %s2 = inlined_call_operand.vmem [shape: f32[1,96], index: 2, kind: input, shape index: {}]
  %s3 = inlined_call_operand.hbm [shape: bf16[32,32], index: 3, kind: input, shape index: {}]
  %s4 = inlined_call_operand.vmem [shape: f32[1,32], index: 4, kind: input, shape index: {}]
  %s5 = inlined_call_operand.vmem [shape: f32[1,32], index: 5, kind: input, shape index: {}]
  %s6 = inlined_call_operand.vmem [shape: f32[1,32], index: 6, kind: input, shape index: {}]
  %s7 = inlined_call_operand.hbm [shape: bf16[32,64], index: 7, kind: input, shape index: {}]
  %s8 = inlined_call_operand.vmem [shape: f32[1,64], index: 8, kind: input, shape index: {}]
  %s9 = inlined_call_operand.vmem [shape: bf16[64,32], index: 9, kind: input, shape index: {}]
  %s10 = inlined_call_operand.vmem [shape: f32[1,32], index: 10, kind: input, shape index: {}]
  %s11 = inlined_call_operand.vmem [shape: f32[1,32], index: 11, kind: input, shape index: {}]
  %s12 = inlined_call_operand.vmem [shape: f32[1,32], index: 12, kind: input, shape index: {}]
  %s13 = inlined_call_operand.hbm [shape: f32[2,16,32], index: 13, kind: output, shape index: {}]
  %s14 = sld [smem:[#allocation0]]
  $region93: #{tpu_custom_call.1} parent=0
    _
  %s16 = ssub.s32 1, %s14
  %s17 = scalar_select 0, %s16, %s14
  $region1: #{tpu_custom_call.1} parent=0
    #allocation2 [shape = 'u8[8192]{0}', space=vmem, size = 0x2000, scoped, tag = 'input window, operand 3, single buffered']
    #allocation3 [shape = 's32[2]{0}', space=sflag, size = 0x8, scoped, tag = 'scoped memory for tpu_custom_call.1']
    #allocation4 [shape = 's32[2]{0}', space=sflag, size = 0x8, scoped, tag = 'scoped memory for tpu_custom_call.1']
    #allocation5 [shape = 'u8[8192]{0}', space=vmem, size = 0x2000, scoped, tag = 'input window, operand 7, single buffered']
    #allocation6 [shape = 's32[1]{0}', space=sflag, size = 0x4, scoped, tag = 'scoped memory for tpu_custom_call.1']
    #allocation7 [shape = 'u8[16384]{0}', space=vmem, size = 0x4000, scoped, tag = 'output window, operand 0']
    %18 = vsyncpa [#allocation3], 0
    %19 = vsyncpa [#allocation6], 0
    %20 = vsyncpa [#allocation4], 0
    %s21 = scalar_lea.sflag [#allocation4], 1
    %22 = vsyncpa %s21, 0
    loop: start=0, step=1, limit=4
    $region2: #{tpu_custom_call.1} parent=1 // loop_pre_header
      _
    $region3: #{tpu_custom_call.1} parent=1 // loop_header
      %s24 = sphi 0, %s28
      %p25 = scmp.ge.s32.totalorder %s24, 4
      %s34 = sphi 0, %s36
      %s37 = sphi 0, %s34
      %s38 = sphi 0, %s37
      %s54 = sphi 0, %s38
      %s58 = sphi 0, %s58
      %s60 = sphi 0, %s58
      %s61 = sphi 0, %s60
      %s75 = sphi 0, %s61
      %s79 = sphi 0, %s79
      %s81 = sphi 0, %s79
      %s82 = sphi 0, %s81
      %s96 = sphi 0, %s82
      %s100 = sphi 0, %s100
      %s102 = sphi 0, %s100
      %s103 = sphi 0, %s102
      %s117 = sphi 0, %s103
      %s121 = sphi 0, %s121
      %s123 = sphi 0, %s121
      %s124 = sphi 0, %s123
      %s138 = sphi 0, %s124
      %s142 = sphi 0, %s142
      %s144 = sphi 0, %s142
      %s145 = sphi 0, %s144
      %s159 = sphi 0, %s145
      %s163 = sphi 0, %s163
      %s165 = sphi 0, %s163
      %s166 = sphi 0, %s165
      %s180 = sphi 0, %s166
      %s184 = sphi 0, %s184
      %s186 = sphi 0, %s184
      %s187 = sphi 0, %s186
      %s201 = sphi 0, %s187
      %s205 = sphi 0, %s205
      %s207 = sphi 0, %s205
      %s208 = sphi 0, %s207
      %s222 = sphi 0, %s208
      %s226 = sphi 0, %s226
      %s228 = sphi 0, %s226
      %s229 = sphi 0, %s228
      %s243 = sphi 0, %s229
      %s247 = sphi 0, %s247
      %s249 = sphi 0, %s247
      %s250 = sphi 0, %s249
      %s264 = sphi 0, %s250
      %s268 = sphi 0, %s268
      %s270 = sphi 0, %s268
      %s271 = sphi 0, %s270
      %s285 = sphi 0, %s271
      %s289 = sphi 0, %s289
      %s291 = sphi 0, %s289
      %s292 = sphi 0, %s291
      %s306 = sphi 0, %s292
      %s312 = sphi 0, %s314
      %s315 = sphi 0, %s312
      %s316 = sphi 0, %s315
      %s332 = sphi 0, %s316
    $region4: #{tpu_custom_call.1} parent=1 // loop_header_branch
      %27 = sbr.rel (%p25) target = $region8
    $region5: #{tpu_custom_call.1} parent=1 // loop_body
      %s29 = ssub.s32 %s24, 1
      %s30 = ssub.s32 %s24, 2
      %s31 = sadd.s32 %s24, 1
      %s32 = ssub.s32 %s24, %s31
      %p33 = scmp.eq.s32.totalorder %s32, 0
      %s35 = sadd.s32 %s34, 1
      %s36 = scalar_select %p33, %s34, %s35
      %p39 = pneg %p33
      %p40 = scmp.eq.s32.totalorder %s24, 1
      %p41 = por %p39, %p40
      %p42 = scmp.ne.s32.totalorder %s34, %s37
      %p43 = scmp.eq.s32.totalorder %s24, 0
      %p44 = por %p42, %p43
      %p45 = scmp.ne.s32.totalorder %s34, %s37
      %p46 = scmp.eq.s32.totalorder %s29, 1
      %p47 = por %p45, %p46
      %p48 = scmp.ne.s32.totalorder %s37, %s38
      %p49 = scmp.eq.s32.totalorder %s29, 0
      %p50 = por %p48, %p49
      %p51 = scmp.ne.s32.totalorder %s37, %s38
      %p52 = scmp.eq.s32.totalorder %s30, 1
      %p53 = por %p51, %p52
      %p55 = scmp.ne.s32.totalorder %s38, %s54
      %p56 = scmp.eq.s32.totalorder %s30, 0
      %p57 = por %p55, %p56
      %s59 = sadd.s32 %s58, 1
      %p62 = scmp.eq.s32.totalorder %s24, 1
      %p63 = scmp.ne.s32.totalorder %s58, %s60
      %p64 = scmp.eq.s32.totalorder %s24, 0
      %p65 = por %p63, %p64
      %p66 = scmp.ne.s32.totalorder %s58, %s60
      %p67 = scmp.eq.s32.totalorder %s29, 1
      %p68 = por %p66, %p67
      %p69 = scmp.ne.s32.totalorder %s60, %s61
      %p70 = scmp.eq.s32.totalorder %s29, 0
      %p71 = por %p69, %p70
      %p72 = scmp.ne.s32.totalorder %s60, %s61
      %p73 = scmp.eq.s32.totalorder %s30, 1
      %p74 = por %p72, %p73
      %p76 = scmp.ne.s32.totalorder %s61, %s75
      %p77 = scmp.eq.s32.totalorder %s30, 0
      %p78 = por %p76, %p77
      %s80 = sadd.s32 %s79, 1
      %p83 = scmp.eq.s32.totalorder %s24, 1
      %p84 = scmp.ne.s32.totalorder %s79, %s81
      %p85 = scmp.eq.s32.totalorder %s24, 0
      %p86 = por %p84, %p85
      %p87 = scmp.ne.s32.totalorder %s79, %s81
      %p88 = scmp.eq.s32.totalorder %s29, 1
      %p89 = por %p87, %p88
      %p90 = scmp.ne.s32.totalorder %s81, %s82
      %p91 = scmp.eq.s32.totalorder %s29, 0
      %p92 = por %p90, %p91
      %p93 = scmp.ne.s32.totalorder %s81, %s82
      %p94 = scmp.eq.s32.totalorder %s30, 1
      %p95 = por %p93, %p94
      %p97 = scmp.ne.s32.totalorder %s82, %s96
      %p98 = scmp.eq.s32.totalorder %s30, 0
      %p99 = por %p97, %p98
      %s101 = sadd.s32 %s100, 1
      %p104 = scmp.eq.s32.totalorder %s24, 1
      %p105 = scmp.ne.s32.totalorder %s100, %s102
      %p106 = scmp.eq.s32.totalorder %s24, 0
      %p107 = por %p105, %p106
      %p108 = scmp.ne.s32.totalorder %s100, %s102
      %p109 = scmp.eq.s32.totalorder %s29, 1
      %p110 = por %p108, %p109
      %p111 = scmp.ne.s32.totalorder %s102, %s103
      %p112 = scmp.eq.s32.totalorder %s29, 0
      %p113 = por %p111, %p112
      %p114 = scmp.ne.s32.totalorder %s102, %s103
      %p115 = scmp.eq.s32.totalorder %s30, 1
      %p116 = por %p114, %p115
      %p118 = scmp.ne.s32.totalorder %s103, %s117
      %p119 = scmp.eq.s32.totalorder %s30, 0
      %p120 = por %p118, %p119
      %s122 = sadd.s32 %s121, 1
      %p125 = scmp.eq.s32.totalorder %s24, 1
      %p126 = scmp.ne.s32.totalorder %s121, %s123
      %p127 = scmp.eq.s32.totalorder %s24, 0
      %p128 = por %p126, %p127
      %p129 = scmp.ne.s32.totalorder %s121, %s123
      %p130 = scmp.eq.s32.totalorder %s29, 1
      %p131 = por %p129, %p130
      %p132 = scmp.ne.s32.totalorder %s123, %s124
      %p133 = scmp.eq.s32.totalorder %s29, 0
      %p134 = por %p132, %p133
      %p135 = scmp.ne.s32.totalorder %s123, %s124
      %p136 = scmp.eq.s32.totalorder %s30, 1
      %p137 = por %p135, %p136
      %p139 = scmp.ne.s32.totalorder %s124, %s138
      %p140 = scmp.eq.s32.totalorder %s30, 0
      %p141 = por %p139, %p140
      %s143 = sadd.s32 %s142, 1
      %p146 = scmp.eq.s32.totalorder %s24, 1
      %p147 = scmp.ne.s32.totalorder %s142, %s144
      %p148 = scmp.eq.s32.totalorder %s24, 0
      %p149 = por %p147, %p148
      %p150 = scmp.ne.s32.totalorder %s142, %s144
      %p151 = scmp.eq.s32.totalorder %s29, 1
      %p152 = por %p150, %p151
      %p153 = scmp.ne.s32.totalorder %s144, %s145
      %p154 = scmp.eq.s32.totalorder %s29, 0
      %p155 = por %p153, %p154
      %p156 = scmp.ne.s32.totalorder %s144, %s145
      %p157 = scmp.eq.s32.totalorder %s30, 1
      %p158 = por %p156, %p157
      %p160 = scmp.ne.s32.totalorder %s145, %s159
      %p161 = scmp.eq.s32.totalorder %s30, 0
      %p162 = por %p160, %p161
      %s164 = sadd.s32 %s163, 1
      %p167 = scmp.eq.s32.totalorder %s24, 1
      %p168 = scmp.ne.s32.totalorder %s163, %s165
      %p169 = scmp.eq.s32.totalorder %s24, 0
      %p170 = por %p168, %p169
      %p171 = scmp.ne.s32.totalorder %s163, %s165
      %p172 = scmp.eq.s32.totalorder %s29, 1
      %p173 = por %p171, %p172
      %p174 = scmp.ne.s32.totalorder %s165, %s166
      %p175 = scmp.eq.s32.totalorder %s29, 0
      %p176 = por %p174, %p175
      %p177 = scmp.ne.s32.totalorder %s165, %s166
      %p178 = scmp.eq.s32.totalorder %s30, 1
      %p179 = por %p177, %p178
      %p181 = scmp.ne.s32.totalorder %s166, %s180
      %p182 = scmp.eq.s32.totalorder %s30, 0
      %p183 = por %p181, %p182
      %s185 = sadd.s32 %s184, 1
      %p188 = scmp.eq.s32.totalorder %s24, 1
      %p189 = scmp.ne.s32.totalorder %s184, %s186
      %p190 = scmp.eq.s32.totalorder %s24, 0
      %p191 = por %p189, %p190
      %p192 = scmp.ne.s32.totalorder %s184, %s186
      %p193 = scmp.eq.s32.totalorder %s29, 1
      %p194 = por %p192, %p193
      %p195 = scmp.ne.s32.totalorder %s186, %s187
      %p196 = scmp.eq.s32.totalorder %s29, 0
      %p197 = por %p195, %p196
      %p198 = scmp.ne.s32.totalorder %s186, %s187
      %p199 = scmp.eq.s32.totalorder %s30, 1
      %p200 = por %p198, %p199
      %p202 = scmp.ne.s32.totalorder %s187, %s201
      %p203 = scmp.eq.s32.totalorder %s30, 0
      %p204 = por %p202, %p203
      %s206 = sadd.s32 %s205, 1
      %p209 = scmp.eq.s32.totalorder %s24, 1
      %p210 = scmp.ne.s32.totalorder %s205, %s207
      %p211 = scmp.eq.s32.totalorder %s24, 0
      %p212 = por %p210, %p211
      %p213 = scmp.ne.s32.totalorder %s205, %s207
      %p214 = scmp.eq.s32.totalorder %s29, 1
      %p215 = por %p213, %p214
      %p216 = scmp.ne.s32.totalorder %s207, %s208
      %p217 = scmp.eq.s32.totalorder %s29, 0
      %p218 = por %p216, %p217
      %p219 = scmp.ne.s32.totalorder %s207, %s208
      %p220 = scmp.eq.s32.totalorder %s30, 1
      %p221 = por %p219, %p220
      %p223 = scmp.ne.s32.totalorder %s208, %s222
      %p224 = scmp.eq.s32.totalorder %s30, 0
      %p225 = por %p223, %p224
      %s227 = sadd.s32 %s226, 1
      %p230 = scmp.eq.s32.totalorder %s24, 1
      %p231 = scmp.ne.s32.totalorder %s226, %s228
      %p232 = scmp.eq.s32.totalorder %s24, 0
      %p233 = por %p231, %p232
      %p234 = scmp.ne.s32.totalorder %s226, %s228
      %p235 = scmp.eq.s32.totalorder %s29, 1
      %p236 = por %p234, %p235
      %p237 = scmp.ne.s32.totalorder %s228, %s229
      %p238 = scmp.eq.s32.totalorder %s29, 0
      %p239 = por %p237, %p238
      %p240 = scmp.ne.s32.totalorder %s228, %s229
      %p241 = scmp.eq.s32.totalorder %s30, 1
      %p242 = por %p240, %p241
      %p244 = scmp.ne.s32.totalorder %s229, %s243
      %p245 = scmp.eq.s32.totalorder %s30, 0
      %p246 = por %p244, %p245
      %s248 = sadd.s32 %s247, 1
      %p251 = scmp.eq.s32.totalorder %s24, 1
      %p252 = scmp.ne.s32.totalorder %s247, %s249
      %p253 = scmp.eq.s32.totalorder %s24, 0
      %p254 = por %p252, %p253
      %p255 = scmp.ne.s32.totalorder %s247, %s249
      %p256 = scmp.eq.s32.totalorder %s29, 1
      %p257 = por %p255, %p256
      %p258 = scmp.ne.s32.totalorder %s249, %s250
      %p259 = scmp.eq.s32.totalorder %s29, 0
      %p260 = por %p258, %p259
      %p261 = scmp.ne.s32.totalorder %s249, %s250
      %p262 = scmp.eq.s32.totalorder %s30, 1
      %p263 = por %p261, %p262
      %p265 = scmp.ne.s32.totalorder %s250, %s264
      %p266 = scmp.eq.s32.totalorder %s30, 0
      %p267 = por %p265, %p266
      %s269 = sadd.s32 %s268, 1
      %p272 = scmp.eq.s32.totalorder %s24, 1
      %p273 = scmp.ne.s32.totalorder %s268, %s270
      %p274 = scmp.eq.s32.totalorder %s24, 0
      %p275 = por %p273, %p274
      %p276 = scmp.ne.s32.totalorder %s268, %s270
      %p277 = scmp.eq.s32.totalorder %s29, 1
      %p278 = por %p276, %p277
      %p279 = scmp.ne.s32.totalorder %s270, %s271
      %p280 = scmp.eq.s32.totalorder %s29, 0
      %p281 = por %p279, %p280
      %p282 = scmp.ne.s32.totalorder %s270, %s271
      %p283 = scmp.eq.s32.totalorder %s30, 1
      %p284 = por %p282, %p283
      %p286 = scmp.ne.s32.totalorder %s271, %s285
      %p287 = scmp.eq.s32.totalorder %s30, 0
      %p288 = por %p286, %p287
      %s290 = sadd.s32 %s289, 1
      %p293 = scmp.eq.s32.totalorder %s24, 1
      %p294 = scmp.ne.s32.totalorder %s289, %s291
      %p295 = scmp.eq.s32.totalorder %s24, 0
      %p296 = por %p294, %p295
      %p297 = scmp.ne.s32.totalorder %s289, %s291
      %p298 = scmp.eq.s32.totalorder %s29, 1
      %p299 = por %p297, %p298
      %p300 = scmp.ne.s32.totalorder %s291, %s292
      %p301 = scmp.eq.s32.totalorder %s29, 0
      %p302 = por %p300, %p301
      %p303 = scmp.ne.s32.totalorder %s291, %s292
      %p304 = scmp.eq.s32.totalorder %s30, 1
      %p305 = por %p303, %p304
      %p307 = scmp.ne.s32.totalorder %s292, %s306
      %p308 = scmp.eq.s32.totalorder %s30, 0
      %p309 = por %p307, %p308
      %s310 = ssub.s32 %s24, %s31
      %p311 = scmp.eq.s32.totalorder %s310, 0
      %s313 = sadd.s32 %s312, 1
      %s314 = scalar_select %p311, %s312, %s313
      %p317 = pneg %p311
      %p318 = scmp.eq.s32.totalorder %s24, 1
      %p319 = por %p317, %p318
      %p320 = scmp.ne.s32.totalorder %s312, %s315
      %p321 = scmp.eq.s32.totalorder %s24, 0
      %p322 = por %p320, %p321
      %p323 = scmp.ne.s32.totalorder %s312, %s315
      %p324 = scmp.eq.s32.totalorder %s29, 1
      %p325 = por %p323, %p324
      %p326 = scmp.ne.s32.totalorder %s315, %s316
      %p327 = scmp.eq.s32.totalorder %s29, 0
      %p328 = por %p326, %p327
      %p329 = scmp.ne.s32.totalorder %s315, %s316
      %p330 = scmp.eq.s32.totalorder %s30, 1
      %p331 = por %p329, %p330
      %p333 = scmp.ne.s32.totalorder %s316, %s332
      %p334 = scmp.eq.s32.totalorder %s30, 0
      %p335 = por %p333, %p334
      %p336 = scmp.le.s32.totalorder 1, %s24
      %p337 = scmp.lt.s32.totalorder %s24, 3
      %p338 = pnand %p336, %p337
      %p339 = pneg %p338
      // Predicated region
      $region9: #{tpu_custom_call.1} parent=5 // pred_check
        _
      $region10: #{tpu_custom_call.1} parent=5 // pred_check_branch
        %341 = sbr.rel (%p338) target = $region12
      $region11: #{tpu_custom_call.1} parent=5 // pred_region
        %s342 = ssub.s32 %s24, 1
        // Predicated region
        $region13: #{tpu_custom_call.1} parent=11 // pred_check
          %p343 = pneg %p71
        $region14: #{tpu_custom_call.1} parent=11 // pred_check_branch
          %345 = sbr.rel (%p343) target = $region16
        $region15: #{tpu_custom_call.1} parent=11 // pred_region
          _
        $region16: #{tpu_custom_call.1} parent=11 // pred_fallthru
          _
        // Predicated region
        $region17: #{tpu_custom_call.1} parent=11 // pred_check
          %p346 = pneg %p92
        $region18: #{tpu_custom_call.1} parent=11 // pred_check_branch
          %348 = sbr.rel (%p346) target = $region20
        $region19: #{tpu_custom_call.1} parent=11 // pred_region
          _
        $region20: #{tpu_custom_call.1} parent=11 // pred_fallthru
          _
        // Predicated region
        $region21: #{tpu_custom_call.1} parent=11 // pred_check
          %p349 = pneg %p113
        $region22: #{tpu_custom_call.1} parent=11 // pred_check_branch
          %351 = sbr.rel (%p349) target = $region24
        $region23: #{tpu_custom_call.1} parent=11 // pred_region
          %s353 = ssub.s32 256, 256
          %354 = vsyncadd [#allocation3], %s353
          %s355 = sshll.u32 [#allocation2], 4
          %s356 = int_to_ptr.vmem [resolvable:$true] %s355
          %361 = dma.hbm_to_vmem [thread:$0]  %s3, 256, %s356, [#allocation3], 64, 64, 4
        $region24: #{tpu_custom_call.1} parent=11 // pred_fallthru
          _
        // Predicated region
        $region25: #{tpu_custom_call.1} parent=11 // pred_check
          %p362 = pneg %p134
        $region26: #{tpu_custom_call.1} parent=11 // pred_check_branch
          %364 = sbr.rel (%p362) target = $region28
        $region27: #{tpu_custom_call.1} parent=11 // pred_region
          _
        $region28: #{tpu_custom_call.1} parent=11 // pred_fallthru
          _
        // Predicated region
        $region29: #{tpu_custom_call.1} parent=11 // pred_check
          %p365 = pneg %p155
        $region30: #{tpu_custom_call.1} parent=11 // pred_check_branch
          %367 = sbr.rel (%p365) target = $region32
        $region31: #{tpu_custom_call.1} parent=11 // pred_region
          _
        $region32: #{tpu_custom_call.1} parent=11 // pred_fallthru
          _
        // Predicated region
        $region33: #{tpu_custom_call.1} parent=11 // pred_check
          %p368 = pneg %p176
        $region34: #{tpu_custom_call.1} parent=11 // pred_check_branch
          %370 = sbr.rel (%p368) target = $region36
        $region35: #{tpu_custom_call.1} parent=11 // pred_region
          _
        $region36: #{tpu_custom_call.1} parent=11 // pred_fallthru
          _
        // Predicated region
        $region37: #{tpu_custom_call.1} parent=11 // pred_check
          %p371 = pneg %p197
        $region38: #{tpu_custom_call.1} parent=11 // pred_check_branch
          %373 = sbr.rel (%p371) target = $region40
        $region39: #{tpu_custom_call.1} parent=11 // pred_region
          %s375 = ssub.s32 256, 256
          %376 = vsyncadd [#allocation6], %s375
          %s377 = sshll.u32 [#allocation5], 4
          %s378 = int_to_ptr.vmem [resolvable:$true] %s377
          %383 = dma.hbm_to_vmem [thread:$0]  %s7, 256, %s378, [#allocation6], 64, 64, 4
        $region40: #{tpu_custom_call.1} parent=11 // pred_fallthru
          _
        // Predicated region
        $region41: #{tpu_custom_call.1} parent=11 // pred_check
          %p384 = pneg %p218
        $region42: #{tpu_custom_call.1} parent=11 // pred_check_branch
          %386 = sbr.rel (%p384) target = $region44
        $region43: #{tpu_custom_call.1} parent=11 // pred_region
          _
        $region44: #{tpu_custom_call.1} parent=11 // pred_fallthru
          _
        // Predicated region
        $region45: #{tpu_custom_call.1} parent=11 // pred_check
          %p387 = pneg %p239
        $region46: #{tpu_custom_call.1} parent=11 // pred_check_branch
          %389 = sbr.rel (%p387) target = $region48
        $region47: #{tpu_custom_call.1} parent=11 // pred_region
          _
        $region48: #{tpu_custom_call.1} parent=11 // pred_fallthru
          _
        // Predicated region
        $region49: #{tpu_custom_call.1} parent=11 // pred_check
          %p390 = pneg %p260
        $region50: #{tpu_custom_call.1} parent=11 // pred_check_branch
          %392 = sbr.rel (%p390) target = $region52
        $region51: #{tpu_custom_call.1} parent=11 // pred_region
          _
        $region52: #{tpu_custom_call.1} parent=11 // pred_fallthru
          _
        // Predicated region
        $region53: #{tpu_custom_call.1} parent=11 // pred_check
          %p393 = pneg %p281
        $region54: #{tpu_custom_call.1} parent=11 // pred_check_branch
          %395 = sbr.rel (%p393) target = $region56
        $region55: #{tpu_custom_call.1} parent=11 // pred_region
          _
        $region56: #{tpu_custom_call.1} parent=11 // pred_fallthru
          _
        // Predicated region
        $region57: #{tpu_custom_call.1} parent=11 // pred_check
          %p396 = pneg %p302
        $region58: #{tpu_custom_call.1} parent=11 // pred_check_branch
          %398 = sbr.rel (%p396) target = $region60
        $region59: #{tpu_custom_call.1} parent=11 // pred_region
          _
        $region60: #{tpu_custom_call.1} parent=11 // pred_fallthru
          _
      $region12: #{tpu_custom_call.1} parent=5 // pred_fallthru
        _
      %p399 = scmp.lt.s32.totalorder %s24, 2
      // Predicated region
      $region61: #{tpu_custom_call.1} parent=5 // pred_check
        %p400 = pneg %p399
      $region62: #{tpu_custom_call.1} parent=5 // pred_check_branch
        %402 = sbr.rel (%p400) target = $region64
      $region63: #{tpu_custom_call.1} parent=5 // pred_region
        // Predicated region
        $region65: #{tpu_custom_call.1} parent=63 // pred_check
          %p403 = pneg %p44
        $region66: #{tpu_custom_call.1} parent=63 // pred_check_branch
          %405 = sbr.rel (%p403) target = $region68
        $region67: #{tpu_custom_call.1} parent=63 // pred_region
          %p406 = scmp.lt.s32.totalorder %s24, 1
          %s407 = scalar_select %p406, %s24, 1
          %s408 = smul.addr %s407, 2
          %s409 = smul.addr %s408, 8
          %s410 = scalar_lea.vmem %s0, %s409
        $region68: #{tpu_custom_call.1} parent=63 // pred_fallthru
          _
      $region64: #{tpu_custom_call.1} parent=5 // pred_fallthru
        _
      %p411 = scmp.le.s32.totalorder 1, %s24
      %p412 = scmp.lt.s32.totalorder %s24, 3
      %p413 = pnand %p411, %p412
      %p414 = pneg %p413
      // Predicated region
      $region69: #{tpu_custom_call.1} parent=5 // pred_check
        _
      $region70: #{tpu_custom_call.1} parent=5 // pred_check_branch
        %416 = sbr.rel (%p413) target = $region72
      $region71: #{tpu_custom_call.1} parent=5 // pred_region
        %s417 = ssub.s32 %s24, 1
        // Predicated region
        $region73: #{tpu_custom_call.1} parent=71 // pred_check
          %p418 = pneg %p113
        $region74: #{tpu_custom_call.1} parent=71 // pred_check_branch
          %420 = sbr.rel (%p418) target = $region76
        $region75: #{tpu_custom_call.1} parent=71 // pred_region
          %421 = dma.done [#allocation3], 256
        $region76: #{tpu_custom_call.1} parent=71 // pred_fallthru
          _
        // Predicated region
        $region77: #{tpu_custom_call.1} parent=71 // pred_check
          %p422 = pneg %p197
        $region78: #{tpu_custom_call.1} parent=71 // pred_check_branch
          %424 = sbr.rel (%p422) target = $region80
        $region79: #{tpu_custom_call.1} parent=71 // pred_region
          %425 = dma.done [#allocation6], 256
        $region80: #{tpu_custom_call.1} parent=71 // pred_fallthru
          _
        %p426 = scmp.lt.s32.totalorder %s29, 1
        %s427 = scalar_select %p426, %s29, 1
        %s428 = smul.addr %s427, 2
        %s429 = smul.addr %s428, 8
        %s430 = scalar_lea.vmem %s0, %s429
        %p431 = pneg %p50
        %p432 = pneg %p47
        %p433 = pneg %p71
        %p434 = pneg %p68
        %p435 = pneg %p92
        %p436 = pneg %p89
        %p437 = pneg %p113
        %p438 = pneg %p110
        %p439 = pneg %p134
        %p440 = pneg %p131
        %p441 = pneg %p155
        %p442 = pneg %p152
        %p443 = pneg %p176
        %p444 = pneg %p173
        %p445 = pneg %p197
        %p446 = pneg %p194
        %p447 = pneg %p218
        %p448 = pneg %p215
        %p449 = pneg %p239
        %p450 = pneg %p236
        %p451 = pneg %p260
        %p452 = pneg %p257
        %p453 = pneg %p281
        %p454 = pneg %p278
        %p455 = pneg %p302
        %p456 = pneg %p299
        %p457 = pneg %p328
        %p458 = pneg %p325
        %s459 = sand.u32 %s315, 1
        %s460 = scalar_lea.sflag [#allocation4], %s459
        %s461 = sand.u32 %s315, 1
        %s462 = smul.addr %s461, 16
        %s463 = scalar_lea.vmem [#allocation7], %s462
        %p464 = scmp.lt.s32.totalorder %s29, 1
        %s465 = scalar_select %p464, %s29, 1
        %s466 = smul.addr %s465, 2
        %s467 = smul.addr %s466, 8
        %s468 = scalar_lea.vmem %s0, %s467
        %v470 = vld [vmem:[%s468] sm:$0xff]
        %v471 = vld [vmem:[%s468 + $0x8] sm:$0xff]
        %v472 = vpack.c.bf16 %v471, %v470
        %v473 = vld [vmem:[%s1] sm:$0xf]
        %v474 = vld [vmem:[%s1 + $0x4] sm:$0xf]
        %v475 = vld [vmem:[%s1 + $0x8] sm:$0xf]
        %v476 = vld [vmem:[%s1 + $0xc] sm:$0xf]
        %v477 = vld [vmem:[%s2] sm:$0x1]
        %v479 = vlaneseq
        %v480 = vshrl.u32 %v479, 7
        %v481 = vsub.s32 0, %v480
        %v482 = vrot.slane %v477, %v481
        %v488 = vunpack.c.l.b16 %v473
        %v489 = vunpack.c.l.b16 %v474
        %v490 = vunpack.c.l.b16 %v475
        %v491 = vunpack.c.l.b16 %v476
        %v492 = vpack.c.b16 %v489, %v488
        %v493 = vpack.c.b16 %v491, %v490
        %vm496 = vcmask 261120
        %v498 = vsel %vm496, %v472, 0
        %500 = vmatprep.subr.bf16.mxu0 0
        %501 = vmatpush1.bf16.msra.mxu0 %v492
        %502 = vmatprep.subr.bf16.mxu0 0
        %503 = vmatpush1.bf16.msra.mxu0 %v493
        %504 = vmatprep.subr.bf16.mxu0 0
        %505 = vmatpush1.bf16.msra.mxu0 0
        %506 = vmatprep.subr.bf16.mxu0 0
        %507 = vmatpush1.bf16.msra.mxu0 0
        %508 = vmatprep.subr.bf16.mxu0 0
        %509 = vmatpush1.bf16.msra.mxu0 0
        %510 = vmatprep.subr.bf16.mxu0 0
        %511 = vmatpush1.bf16.msra.mxu0 0
        %512 = vmatprep.subr.bf16.mxu0 0
        %513 = vmatpush1.bf16.msra.mxu0 0
        %514 = vmatprep.subr.bf16.mxu0 0
        %515 = vmatpush1.bf16.msra.mxu0 0
        %516 = vmatprep.subr.bf16.mxu0 0
        %517 = vmatpush1.bf16.msra.mxu0 0
        %518 = vmatprep.subr.bf16.mxu0 0
        %519 = vmatpush1.bf16.msra.mxu0 0
        %520 = vmatprep.subr.bf16.mxu0 0
        %521 = vmatpush1.bf16.msra.mxu0 0
        %522 = vmatprep.subr.bf16.mxu0 0
        %523 = vmatpush1.bf16.msra.mxu0 0
        %524 = vmatprep.subr.bf16.mxu0 0
        %525 = vmatpush1.bf16.msra.mxu0 0
        %526 = vmatprep.subr.bf16.mxu0 0
        %527 = vmatpush1.bf16.msra.mxu0 0
        %528 = vmatprep.subr.bf16.mxu0 0
        %529 = vmatpush1.bf16.msra.mxu0 0
        %530 = vmatprep.subr.bf16.mxu0 0
        %531 = vmatpush1.bf16.msra.mxu0 0
        %532 = vmatprep.mubr.bf16.mxu0 0
        %533 = vmatmul.mubr.bf16.gmra.mrb[0].mxu0 %v498
        %v534 = vpop.f32.mrb[0].mxu0
        %v535 = vadd.f32 %v482, %v534
        %v536 = vpop.f32.mrb[0].mxu0
        %v537 = vpop.f32.mrb[0].mxu0
        %v538 = vadd.f32 %v482, %v537
        %v539 = vpop.f32.mrb[0].mxu0
        %540 = vdwg.mxu0
        %v541 = vmul.f32 %v535, 0.35355338
        %v542 = vmul.f32 %v538, 0.35355338
        %v543 = vpack.c.bf16 %v542, %v541
        %v544 = vpack.c.bf16 %v538, %v535
        %546 = vrot.lane.b32.xlu0 %v544, 96
        %v547 = vpop.permute.xlu0 %546
        %vm548 = vcmask 64512
        %v550 = vsel %vm548, %v543, 0
        %v553 = vsel %vm548, %v547, 0
        %555 = vmatprep.subr.bf16.mxu0 0
        %556 = vmatpush1.bf16.xpose.msra.mxu0 %v553
        %557 = vmatprep.subr.bf16.mxu0 0
        %558 = vmatpush1.bf16.xpose.msra.mxu0 0
        %559 = vmatprep.subr.bf16.mxu0 0
        %560 = vmatpush1.bf16.xpose.msra.mxu0 0
        %561 = vmatprep.subr.bf16.mxu0 0
        %562 = vmatpush1.bf16.xpose.msra.mxu0 0
        %563 = vmatprep.subr.bf16.mxu0 0
        %564 = vmatpush1.bf16.xpose.msra.mxu0 0
        %565 = vmatprep.subr.bf16.mxu0 0
        %566 = vmatpush1.bf16.xpose.msra.mxu0 0
        %567 = vmatprep.subr.bf16.mxu0 0
        %568 = vmatpush1.bf16.xpose.msra.mxu0 0
        %569 = vmatprep.subr.bf16.mxu0 0
        %570 = vmatpush1.bf16.xpose.msra.mxu0 0
        %571 = vmatprep.subr.bf16.mxu0 0
        %572 = vmatpush1.bf16.xpose.msra.mxu0 0
        %573 = vmatprep.subr.bf16.mxu0 0
        %574 = vmatpush1.bf16.xpose.msra.mxu0 0
        %575 = vmatprep.subr.bf16.mxu0 0
        %576 = vmatpush1.bf16.xpose.msra.mxu0 0
        %577 = vmatprep.subr.bf16.mxu0 0
        %578 = vmatpush1.bf16.xpose.msra.mxu0 0
        %579 = vmatprep.subr.bf16.mxu0 0
        %580 = vmatpush1.bf16.xpose.msra.mxu0 0
        %581 = vmatprep.subr.bf16.mxu0 0
        %582 = vmatpush1.bf16.xpose.msra.mxu0 0
        %583 = vmatprep.subr.bf16.mxu0 0
        %584 = vmatpush1.bf16.xpose.msra.mxu0 0
        %585 = vmatprep.subr.bf16.mxu0 0
        %586 = vmatpush1.bf16.xpose.msra.mxu0 0
        %587 = vmatprep.mubr.bf16.mxu0 0
        %588 = vmatmul.mubr.bf16.gmra.mrb[0].mxu0 %v550
        %v589 = vpop.f32.mrb[0].mxu0
        %v590 = vadd.f32 0.0, %v589
        %v591 = vpop.f32.mrb[0].mxu0
        %v592 = vpop.f32.mrb[0].mxu0
        %v593 = vadd.f32 0.0, %v592
        %v594 = vpop.f32.mrb[0].mxu0
        %595 = vdwg.mxu0
        %vm596 = vcmask 130048
        %v597 = vsel %vm596, %v590, -inf
        %598 = vmax.xlane.f32.xlu0 %v597
        %v599 = vpop.xlane.xlu0 %598
        %v600 = vsel %vm596, %v593, -inf
        %601 = vmax.xlane.f32.xlu0 %v600
        %v602 = vpop.xlane.xlu0 %601
        %v603 = vsub.f32 %v590, %v599
        %v604 = vsub.f32 %v593, %v602
        %v605 = vmul.f32 %v603, 1.442695
        %v606 = vpow.pop %v605
        %v607 = vmul.f32 %v604, 1.442695
        %v608 = vpow.pop %v607
        %v609 = vsel %vm596, %v606, 0.0
        %610 = vadd.xlane.f32.xlu0 %v609
        %v611 = vpop.xlane.xlu0 %610
        %v612 = vsel %vm596, %v608, 0.0
        %613 = vadd.xlane.f32.xlu0 %v612
        %v614 = vpop.xlane.xlu0 %613
        %v615 = vrcp.pop %v611
        %v616 = vrcp.pop %v614
        %v617 = vmul.f32 %v611, %v615
        %v618 = vmul.f32 %v614, %v616
        %v619 = vsub.f32 2.0, %v617
        %v620 = vsub.f32 2.0, %v618
        %v621 = vmul.f32 %v615, %v619
        %v622 = vmul.f32 %v616, %v620
        %v623 = vmul.f32 %v606, %v621
        %v624 = vmul.f32 %v608, %v622
        %v625 = vpack.c.bf16 %v624, %v623
        %626 = vrot.lane.b32.xlu0 %v544, 64
        %v627 = vpop.permute.xlu0 %626
        %v630 = vsel %vm596, %v625, 0
        %632 = vmatprep.subr.bf16.mxu0 0
        %633 = vmatpush1.bf16.msra.mxu0 %v627
        %634 = vmatprep.subr.bf16.mxu0 0
        %635 = vmatpush1.bf16.msra.mxu0 0
        %636 = vmatprep.subr.bf16.mxu0 0
        %637 = vmatpush1.bf16.msra.mxu0 0
        %638 = vmatprep.subr.bf16.mxu0 0
        %639 = vmatpush1.bf16.msra.mxu0 0
        %640 = vmatprep.subr.bf16.mxu0 0
        %641 = vmatpush1.bf16.msra.mxu0 0
        %642 = vmatprep.subr.bf16.mxu0 0
        %643 = vmatpush1.bf16.msra.mxu0 0
        %644 = vmatprep.subr.bf16.mxu0 0
        %645 = vmatpush1.bf16.msra.mxu0 0
        %646 = vmatprep.subr.bf16.mxu0 0
        %647 = vmatpush1.bf16.msra.mxu0 0
        %648 = vmatprep.subr.bf16.mxu0 0
        %649 = vmatpush1.bf16.msra.mxu0 0
        %650 = vmatprep.subr.bf16.mxu0 0
        %651 = vmatpush1.bf16.msra.mxu0 0
        %652 = vmatprep.subr.bf16.mxu0 0
        %653 = vmatpush1.bf16.msra.mxu0 0
        %654 = vmatprep.subr.bf16.mxu0 0
        %655 = vmatpush1.bf16.msra.mxu0 0
        %656 = vmatprep.subr.bf16.mxu0 0
        %657 = vmatpush1.bf16.msra.mxu0 0
        %658 = vmatprep.subr.bf16.mxu0 0
        %659 = vmatpush1.bf16.msra.mxu0 0
        %660 = vmatprep.subr.bf16.mxu0 0
        %661 = vmatpush1.bf16.msra.mxu0 0
        %662 = vmatprep.subr.bf16.mxu0 0
        %663 = vmatpush1.bf16.msra.mxu0 0
        %664 = vmatprep.mubr.bf16.mxu0 0
        %665 = vmatmul.mubr.bf16.gmra.mrb[0].mxu0 %v630
        %v666 = vpop.f32.mrb[0].mxu0
        %v667 = vadd.f32 0.0, %v666
        %v668 = vpop.f32.mrb[0].mxu0
        %v669 = vpop.f32.mrb[0].mxu0
        %v670 = vadd.f32 0.0, %v669
        %v671 = vpop.f32.mrb[0].mxu0
        %672 = vdwg.mxu0
        %674 = vrot.lane.b32.xlu0 %v543, 120
        %v675 = vpop.permute.xlu0 %674
        %676 = vrot.lane.b32.xlu0 %v544, 88
        %v677 = vpop.permute.xlu0 %676
        %v679 = vsel %vm548, %v675, 0
        %v682 = vsel %vm548, %v677, 0
        %684 = vmatprep.subr.bf16.mxu0 0
        %685 = vmatpush1.bf16.xpose.msra.mxu0 %v682
        %686 = vmatprep.subr.bf16.mxu0 0
        %687 = vmatpush1.bf16.xpose.msra.mxu0 0
        %688 = vmatprep.subr.bf16.mxu0 0
        %689 = vmatpush1.bf16.xpose.msra.mxu0 0
        %690 = vmatprep.subr.bf16.mxu0 0
        %691 = vmatpush1.bf16.xpose.msra.mxu0 0
        %692 = vmatprep.subr.bf16.mxu0 0
        %693 = vmatpush1.bf16.xpose.msra.mxu0 0
        %694 = vmatprep.subr.bf16.mxu0 0
        %695 = vmatpush1.bf16.xpose.msra.mxu0 0
        %696 = vmatprep.subr.bf16.mxu0 0
        %697 = vmatpush1.bf16.xpose.msra.mxu0 0
        %698 = vmatprep.subr.bf16.mxu0 0
        %699 = vmatpush1.bf16.xpose.msra.mxu0 0
        %700 = vmatprep.subr.bf16.mxu0 0
        %701 = vmatpush1.bf16.xpose.msra.mxu0 0
        %702 = vmatprep.subr.bf16.mxu0 0
        %703 = vmatpush1.bf16.xpose.msra.mxu0 0
        %704 = vmatprep.subr.bf16.mxu0 0
        %705 = vmatpush1.bf16.xpose.msra.mxu0 0
        %706 = vmatprep.subr.bf16.mxu0 0
        %707 = vmatpush1.bf16.xpose.msra.mxu0 0
        %708 = vmatprep.subr.bf16.mxu0 0
        %709 = vmatpush1.bf16.xpose.msra.mxu0 0
        %710 = vmatprep.subr.bf16.mxu0 0
        %711 = vmatpush1.bf16.xpose.msra.mxu0 0
        %712 = vmatprep.subr.bf16.mxu0 0
        %713 = vmatpush1.bf16.xpose.msra.mxu0 0
        %714 = vmatprep.subr.bf16.mxu0 0
        %715 = vmatpush1.bf16.xpose.msra.mxu0 0
        %716 = vmatprep.mubr.bf16.mxu0 0
        %717 = vmatmul.mubr.bf16.gmra.mrb[0].mxu0 %v679
        %v718 = vpop.f32.mrb[0].mxu0
        %v719 = vadd.f32 0.0, %v718
        %v720 = vpop.f32.mrb[0].mxu0
        %v721 = vpop.f32.mrb[0].mxu0
        %v722 = vadd.f32 0.0, %v721
        %v723 = vpop.f32.mrb[0].mxu0
        %724 = vdwg.mxu0
        %v725 = vsel %vm596, %v719, -inf
        %726 = vmax.xlane.f32.xlu0 %v725
        %v727 = vpop.xlane.xlu0 %726
        %v728 = vsel %vm596, %v722, -inf
        %729 = vmax.xlane.f32.xlu0 %v728
        %v730 = vpop.xlane.xlu0 %729
        %v731 = vsub.f32 %v719, %v727
        %v732 = vsub.f32 %v722, %v730
        %v733 = vmul.f32 %v731, 1.442695
        %v734 = vpow.pop %v733
        %v735 = vmul.f32 %v732, 1.442695
        %v736 = vpow.pop %v735
        %v737 = vsel %vm596, %v734, 0.0
        %738 = vadd.xlane.f32.xlu0 %v737
        %v739 = vpop.xlane.xlu0 %738
        %v740 = vsel %vm596, %v736, 0.0
        %741 = vadd.xlane.f32.xlu0 %v740
        %v742 = vpop.xlane.xlu0 %741
        %v743 = vrcp.pop %v739
        %v744 = vrcp.pop %v742
        %v745 = vmul.f32 %v739, %v743
        %v746 = vmul.f32 %v742, %v744
        %v747 = vsub.f32 2.0, %v745
        %v748 = vsub.f32 2.0, %v746
        %v749 = vmul.f32 %v743, %v747
        %v750 = vmul.f32 %v744, %v748
        %v751 = vmul.f32 %v734, %v749
        %v752 = vmul.f32 %v736, %v750
        %v753 = vpack.c.bf16 %v752, %v751
        %754 = vrot.lane.b32.xlu0 %v544, 56
        %v755 = vpop.permute.xlu0 %754
        %v758 = vsel %vm596, %v753, 0
        %760 = vmatprep.subr.bf16.mxu0 0
        %761 = vmatpush1.bf16.msra.mxu0 %v755
        %762 = vmatprep.subr.bf16.mxu0 0
        %763 = vmatpush1.bf16.msra.mxu0 0
        %764 = vmatprep.subr.bf16.mxu0 0
        %765 = vmatpush1.bf16.msra.mxu0 0
        %766 = vmatprep.subr.bf16.mxu0 0
        %767 = vmatpush1.bf16.msra.mxu0 0
        %768 = vmatprep.subr.bf16.mxu0 0
        %769 = vmatpush1.bf16.msra.mxu0 0
        %770 = vmatprep.subr.bf16.mxu0 0
        %771 = vmatpush1.bf16.msra.mxu0 0
        %772 = vmatprep.subr.bf16.mxu0 0
        %773 = vmatpush1.bf16.msra.mxu0 0
        %774 = vmatprep.subr.bf16.mxu0 0
        %775 = vmatpush1.bf16.msra.mxu0 0
        %776 = vmatprep.subr.bf16.mxu0 0
        %777 = vmatpush1.bf16.msra.mxu0 0
        %778 = vmatprep.subr.bf16.mxu0 0
        %779 = vmatpush1.bf16.msra.mxu0 0
        %780 = vmatprep.subr.bf16.mxu0 0
        %781 = vmatpush1.bf16.msra.mxu0 0
        %782 = vmatprep.subr.bf16.mxu0 0
        %783 = vmatpush1.bf16.msra.mxu0 0
        %784 = vmatprep.subr.bf16.mxu0 0
        %785 = vmatpush1.bf16.msra.mxu0 0
        %786 = vmatprep.subr.bf16.mxu0 0
        %787 = vmatpush1.bf16.msra.mxu0 0
        %788 = vmatprep.subr.bf16.mxu0 0
        %789 = vmatpush1.bf16.msra.mxu0 0
        %790 = vmatprep.subr.bf16.mxu0 0
        %791 = vmatpush1.bf16.msra.mxu0 0
        %792 = vmatprep.mubr.bf16.mxu0 0
        %793 = vmatmul.mubr.bf16.gmra.mrb[0].mxu0 %v758
        %v794 = vpop.f32.mrb[0].mxu0
        %v795 = vadd.f32 0.0, %v794
        %v796 = vpop.f32.mrb[0].mxu0
        %v797 = vpop.f32.mrb[0].mxu0
        %v798 = vadd.f32 0.0, %v797
        %v799 = vpop.f32.mrb[0].mxu0
        %800 = vdwg.mxu0
        %801 = vrot.lane.b32.xlu0 %v543, 112
        %v802 = vpop.permute.xlu0 %801
        %803 = vrot.lane.b32.xlu0 %v544, 80
        %v804 = vpop.permute.xlu0 %803
        %v806 = vsel %vm548, %v802, 0
        %v809 = vsel %vm548, %v804, 0
        %811 = vmatprep.subr.bf16.mxu0 0
        %812 = vmatpush1.bf16.xpose.msra.mxu0 %v809
        %813 = vmatprep.subr.bf16.mxu0 0
        %814 = vmatpush1.bf16.xpose.msra.mxu0 0
        %815 = vmatprep.subr.bf16.mxu0 0
        %816 = vmatpush1.bf16.xpose.msra.mxu0 0
        %817 = vmatprep.subr.bf16.mxu0 0
        %818 = vmatpush1.bf16.xpose.msra.mxu0 0
        %819 = vmatprep.subr.bf16.mxu0 0
        %820 = vmatpush1.bf16.xpose.msra.mxu0 0
        %821 = vmatprep.subr.bf16.mxu0 0
        %822 = vmatpush1.bf16.xpose.msra.mxu0 0
        %823 = vmatprep.subr.bf16.mxu0 0
        %824 = vmatpush1.bf16.xpose.msra.mxu0 0
        %825 = vmatprep.subr.bf16.mxu0 0
        %826 = vmatpush1.bf16.xpose.msra.mxu0 0
        %827 = vmatprep.subr.bf16.mxu0 0
        %828 = vmatpush1.bf16.xpose.msra.mxu0 0
        %829 = vmatprep.subr.bf16.mxu0 0
        %830 = vmatpush1.bf16.xpose.msra.mxu0 0
        %831 = vmatprep.subr.bf16.mxu0 0
        %832 = vmatpush1.bf16.xpose.msra.mxu0 0
        %833 = vmatprep.subr.bf16.mxu0 0
        %834 = vmatpush1.bf16.xpose.msra.mxu0 0
        %835 = vmatprep.subr.bf16.mxu0 0
        %836 = vmatpush1.bf16.xpose.msra.mxu0 0
        %837 = vmatprep.subr.bf16.mxu0 0
        %838 = vmatpush1.bf16.xpose.msra.mxu0 0
        %839 = vmatprep.subr.bf16.mxu0 0
        %840 = vmatpush1.bf16.xpose.msra.mxu0 0
        %841 = vmatprep.subr.bf16.mxu0 0
        %842 = vmatpush1.bf16.xpose.msra.mxu0 0
        %843 = vmatprep.mubr.bf16.mxu0 0
        %844 = vmatmul.mubr.bf16.gmra.mrb[0].mxu0 %v806
        %v845 = vpop.f32.mrb[0].mxu0
        %v846 = vadd.f32 0.0, %v845
        %v847 = vpop.f32.mrb[0].mxu0
        %v848 = vpop.f32.mrb[0].mxu0
        %v849 = vadd.f32 0.0, %v848
        %v850 = vpop.f32.mrb[0].mxu0
        %851 = vdwg.mxu0
        %v852 = vsel %vm596, %v846, -inf
        %853 = vmax.xlane.f32.xlu0 %v852
        %v854 = vpop.xlane.xlu0 %853
        %v855 = vsel %vm596, %v849, -inf
        %856 = vmax.xlane.f32.xlu0 %v855
        %v857 = vpop.xlane.xlu0 %856
        %v858 = vsub.f32 %v846, %v854
        %v859 = vsub.f32 %v849, %v857
        %v860 = vmul.f32 %v858, 1.442695
        %v861 = vpow.pop %v860
        %v862 = vmul.f32 %v859, 1.442695
        %v863 = vpow.pop %v862
        %v864 = vsel %vm596, %v861, 0.0
        %865 = vadd.xlane.f32.xlu0 %v864
        %v866 = vpop.xlane.xlu0 %865
        %v867 = vsel %vm596, %v863, 0.0
        %868 = vadd.xlane.f32.xlu0 %v867
        %v869 = vpop.xlane.xlu0 %868
        %v870 = vrcp.pop %v866
        %v871 = vrcp.pop %v869
        %v872 = vmul.f32 %v866, %v870
        %v873 = vmul.f32 %v869, %v871
        %v874 = vsub.f32 2.0, %v872
        %v875 = vsub.f32 2.0, %v873
        %v876 = vmul.f32 %v870, %v874
        %v877 = vmul.f32 %v871, %v875
        %v878 = vmul.f32 %v861, %v876
        %v879 = vmul.f32 %v863, %v877
        %v880 = vpack.c.bf16 %v879, %v878
        %881 = vrot.lane.b32.xlu0 %v544, 48
        %v882 = vpop.permute.xlu0 %881
        %v885 = vsel %vm596, %v880, 0
        %887 = vmatprep.subr.bf16.mxu0 0
        %888 = vmatpush1.bf16.msra.mxu0 %v882
        %889 = vmatprep.subr.bf16.mxu0 0
        %890 = vmatpush1.bf16.msra.mxu0 0
        %891 = vmatprep.subr.bf16.mxu0 0
        %892 = vmatpush1.bf16.msra.mxu0 0
        %893 = vmatprep.subr.bf16.mxu0 0
        %894 = vmatpush1.bf16.msra.mxu0 0
        %895 = vmatprep.subr.bf16.mxu0 0
        %896 = vmatpush1.bf16.msra.mxu0 0
        %897 = vmatprep.subr.bf16.mxu0 0
        %898 = vmatpush1.bf16.msra.mxu0 0
        %899 = vmatprep.subr.bf16.mxu0 0
        %900 = vmatpush1.bf16.msra.mxu0 0
        %901 = vmatprep.subr.bf16.mxu0 0
        %902 = vmatpush1.bf16.msra.mxu0 0
        %903 = vmatprep.subr.bf16.mxu0 0
        %904 = vmatpush1.bf16.msra.mxu0 0
        %905 = vmatprep.subr.bf16.mxu0 0
        %906 = vmatpush1.bf16.msra.mxu0 0
        %907 = vmatprep.subr.bf16.mxu0 0
        %908 = vmatpush1.bf16.msra.mxu0 0
        %909 = vmatprep.subr.bf16.mxu0 0
        %910 = vmatpush1.bf16.msra.mxu0 0
        %911 = vmatprep.subr.bf16.mxu0 0
        %912 = vmatpush1.bf16.msra.mxu0 0
        %913 = vmatprep.subr.bf16.mxu0 0
        %914 = vmatpush1.bf16.msra.mxu0 0
        %915 = vmatprep.subr.bf16.mxu0 0
        %916 = vmatpush1.bf16.msra.mxu0 0
        %917 = vmatprep.subr.bf16.mxu0 0
        %918 = vmatpush1.bf16.msra.mxu0 0
        %919 = vmatprep.mubr.bf16.mxu0 0
        %920 = vmatmul.mubr.bf16.gmra.mrb[0].mxu0 %v885
        %v921 = vpop.f32.mrb[0].mxu0
        %v922 = vadd.f32 0.0, %v921
        %v923 = vpop.f32.mrb[0].mxu0
        %v924 = vpop.f32.mrb[0].mxu0
        %v925 = vadd.f32 0.0, %v924
        %v926 = vpop.f32.mrb[0].mxu0
        %927 = vdwg.mxu0
        %928 = vrot.lane.b32.xlu0 %v543, 104
        %v929 = vpop.permute.xlu0 %928
        %930 = vrot.lane.b32.xlu0 %v544, 72
        %v931 = vpop.permute.xlu0 %930
        %v933 = vsel %vm548, %v929, 0
        %v936 = vsel %vm548, %v931, 0
        %938 = vmatprep.subr.bf16.mxu0 0
        %939 = vmatpush1.bf16.xpose.msra.mxu0 %v936
        %940 = vmatprep.subr.bf16.mxu0 0
        %941 = vmatpush1.bf16.xpose.msra.mxu0 0
        %942 = vmatprep.subr.bf16.mxu0 0
        %943 = vmatpush1.bf16.xpose.msra.mxu0 0
        %944 = vmatprep.subr.bf16.mxu0 0
        %945 = vmatpush1.bf16.xpose.msra.mxu0 0
        %946 = vmatprep.subr.bf16.mxu0 0
        %947 = vmatpush1.bf16.xpose.msra.mxu0 0
        %948 = vmatprep.subr.bf16.mxu0 0
        %949 = vmatpush1.bf16.xpose.msra.mxu0 0
        %950 = vmatprep.subr.bf16.mxu0 0
        %951 = vmatpush1.bf16.xpose.msra.mxu0 0
        %952 = vmatprep.subr.bf16.mxu0 0
        %953 = vmatpush1.bf16.xpose.msra.mxu0 0
        %954 = vmatprep.subr.bf16.mxu0 0
        %955 = vmatpush1.bf16.xpose.msra.mxu0 0
        %956 = vmatprep.subr.bf16.mxu0 0
        %957 = vmatpush1.bf16.xpose.msra.mxu0 0
        %958 = vmatprep.subr.bf16.mxu0 0
        %959 = vmatpush1.bf16.xpose.msra.mxu0 0
        %960 = vmatprep.subr.bf16.mxu0 0
        %961 = vmatpush1.bf16.xpose.msra.mxu0 0
        %962 = vmatprep.subr.bf16.mxu0 0
        %963 = vmatpush1.bf16.xpose.msra.mxu0 0
        %964 = vmatprep.subr.bf16.mxu0 0
        %965 = vmatpush1.bf16.xpose.msra.mxu0 0
        %966 = vmatprep.subr.bf16.mxu0 0
        %967 = vmatpush1.bf16.xpose.msra.mxu0 0
        %968 = vmatprep.subr.bf16.mxu0 0
        %969 = vmatpush1.bf16.xpose.msra.mxu0 0
        %970 = vmatprep.mubr.bf16.mxu0 0
        %971 = vmatmul.mubr.bf16.gmra.mrb[0].mxu0 %v933
        %v972 = vpop.f32.mrb[0].mxu0
        %v973 = vadd.f32 0.0, %v972
        %v974 = vpop.f32.mrb[0].mxu0
        %v975 = vpop.f32.mrb[0].mxu0
        %v976 = vadd.f32 0.0, %v975
        %v977 = vpop.f32.mrb[0].mxu0
        %978 = vdwg.mxu0
        %v979 = vsel %vm596, %v973, -inf
        %980 = vmax.xlane.f32.xlu0 %v979
        %v981 = vpop.xlane.xlu0 %980
        %v982 = vsel %vm596, %v976, -inf
        %983 = vmax.xlane.f32.xlu0 %v982
        %v984 = vpop.xlane.xlu0 %983
        %v985 = vsub.f32 %v973, %v981
        %v986 = vsub.f32 %v976, %v984
        %v987 = vmul.f32 %v985, 1.442695
        %v988 = vpow.pop %v987
        %v989 = vmul.f32 %v986, 1.442695
        %v990 = vpow.pop %v989
        %v991 = vsel %vm596, %v988, 0.0
        %992 = vadd.xlane.f32.xlu0 %v991
        %v993 = vpop.xlane.xlu0 %992
        %v994 = vsel %vm596, %v990, 0.0
        %995 = vadd.xlane.f32.xlu0 %v994
        %v996 = vpop.xlane.xlu0 %995
        %v997 = vrcp.pop %v993
        %v998 = vrcp.pop %v996
        %v999 = vmul.f32 %v993, %v997
        %v1000 = vmul.f32 %v996, %v998
        %v1001 = vsub.f32 2.0, %v999
        %v1002 = vsub.f32 2.0, %v1000
        %v1003 = vmul.f32 %v997, %v1001
        %v1004 = vmul.f32 %v998, %v1002
        %v1005 = vmul.f32 %v988, %v1003
        %v1006 = vmul.f32 %v990, %v1004
        %v1007 = vpack.c.bf16 %v1006, %v1005
        %1008 = vrot.lane.b32.xlu0 %v544, 40
        %v1009 = vpop.permute.xlu0 %1008
        %v1012 = vsel %vm596, %v1007, 0
        %1014 = vmatprep.subr.bf16.mxu0 0
        %1015 = vmatpush1.bf16.msra.mxu0 %v1009
        %1016 = vmatprep.subr.bf16.mxu0 0
        %1017 = vmatpush1.bf16.msra.mxu0 0
        %1018 = vmatprep.subr.bf16.mxu0 0
        %1019 = vmatpush1.bf16.msra.mxu0 0
        %1020 = vmatprep.subr.bf16.mxu0 0
        %1021 = vmatpush1.bf16.msra.mxu0 0
        %1022 = vmatprep.subr.bf16.mxu0 0
        %1023 = vmatpush1.bf16.msra.mxu0 0
        %1024 = vmatprep.subr.bf16.mxu0 0
        %1025 = vmatpush1.bf16.msra.mxu0 0
        %1026 = vmatprep.subr.bf16.mxu0 0
        %1027 = vmatpush1.bf16.msra.mxu0 0
        %1028 = vmatprep.subr.bf16.mxu0 0
        %1029 = vmatpush1.bf16.msra.mxu0 0
        %1030 = vmatprep.subr.bf16.mxu0 0
        %1031 = vmatpush1.bf16.msra.mxu0 0
        %1032 = vmatprep.subr.bf16.mxu0 0
        %1033 = vmatpush1.bf16.msra.mxu0 0
        %1034 = vmatprep.subr.bf16.mxu0 0
        %1035 = vmatpush1.bf16.msra.mxu0 0
        %1036 = vmatprep.subr.bf16.mxu0 0
        %1037 = vmatpush1.bf16.msra.mxu0 0
        %1038 = vmatprep.subr.bf16.mxu0 0
        %1039 = vmatpush1.bf16.msra.mxu0 0
        %1040 = vmatprep.subr.bf16.mxu0 0
        %1041 = vmatpush1.bf16.msra.mxu0 0
        %1042 = vmatprep.subr.bf16.mxu0 0
        %1043 = vmatpush1.bf16.msra.mxu0 0
        %1044 = vmatprep.subr.bf16.mxu0 0
        %1045 = vmatpush1.bf16.msra.mxu0 0
        %1046 = vmatprep.mubr.bf16.mxu0 0
        %1047 = vmatmul.mubr.bf16.gmra.mrb[0].mxu0 %v1012
        %v1048 = vpop.f32.mrb[0].mxu0
        %v1049 = vadd.f32 0.0, %v1048
        %v1050 = vpop.f32.mrb[0].mxu0
        %v1051 = vpop.f32.mrb[0].mxu0
        %v1052 = vadd.f32 0.0, %v1051
        %v1053 = vpop.f32.mrb[0].mxu0
        %1054 = vdwg.mxu0
        %1057 = vrot.lane.b32.xlu0 %v795, 8
        %v1058 = vpop.permute.xlu0 %1057
        %1059 = vrot.lane.b32.xlu0 %v798, 8
        %v1060 = vpop.permute.xlu0 %1059
        %1065 = vrot.lane.b32.xlu0 %v922, 16
        %v1066 = vpop.permute.xlu0 %1065
        %1067 = vrot.lane.b32.xlu0 %v925, 16
        %v1068 = vpop.permute.xlu0 %1067
        %1073 = vrot.lane.b32.xlu0 %v1049, 24
        %v1074 = vpop.permute.xlu0 %1073
        %1075 = vrot.lane.b32.xlu0 %v1052, 24
        %v1076 = vpop.permute.xlu0 %1075
        %v1079 = vsel %vm548, %v667, %v1058
        %v1080 = vsel %vm548, %v670, %v1060
        %v1081 = vsel %vm596, %v1079, %v1066
        %v1082 = vsel %vm596, %v1080, %v1068
        %vm1083 = vcmask 195584
        %v1084 = vsel %vm1083, %v1081, %v1074
        %v1085 = vsel %vm1083, %v1082, %v1076
        %v1086 = vpack.c.bf16 %v1085, %v1084
        %v1087 = vld [vmem:[#allocation2] sm:$0xf]
        %v1088 = vld [vmem:[#allocation2 + $0x4] sm:$0xf]
        %v1089 = vld [vmem:[#allocation2 + $0x8] sm:$0xf]
        %v1090 = vld [vmem:[#allocation2 + $0xc] sm:$0xf]
        %v1091 = vld [vmem:[%s4] sm:$0x1]
        %v1093 = vlaneseq
        %v1094 = vshrl.u32 %v1093, 7
        %v1095 = vsub.s32 0, %v1094
        %v1096 = vrot.slane %v1091, %v1095
        %v1102 = vunpack.c.l.b16 %v1087
        %v1103 = vunpack.c.l.b16 %v1088
        %v1104 = vunpack.c.l.b16 %v1089
        %v1105 = vunpack.c.l.b16 %v1090
        %v1106 = vpack.c.b16 %v1103, %v1102
        %v1107 = vpack.c.b16 %v1105, %v1104
        %v1111 = vsel %vm496, %v1086, 0
        %1113 = vmatprep.subr.bf16.mxu0 0
        %1114 = vmatpush1.bf16.msra.mxu0 %v1106
        %1115 = vmatprep.subr.bf16.mxu0 0
        %1116 = vmatpush1.bf16.msra.mxu0 %v1107
        %1117 = vmatprep.subr.bf16.mxu0 0
        %1118 = vmatpush1.bf16.msra.mxu0 0
        %1119 = vmatprep.subr.bf16.mxu0 0
        %1120 = vmatpush1.bf16.msra.mxu0 0
        %1121 = vmatprep.subr.bf16.mxu0 0
        %1122 = vmatpush1.bf16.msra.mxu0 0
        %1123 = vmatprep.subr.bf16.mxu0 0
        %1124 = vmatpush1.bf16.msra.mxu0 0
        %1125 = vmatprep.subr.bf16.mxu0 0
        %1126 = vmatpush1.bf16.msra.mxu0 0
        %1127 = vmatprep.subr.bf16.mxu0 0
        %1128 = vmatpush1.bf16.msra.mxu0 0
        %1129 = vmatprep.subr.bf16.mxu0 0
        %1130 = vmatpush1.bf16.msra.mxu0 0
        %1131 = vmatprep.subr.bf16.mxu0 0
        %1132 = vmatpush1.bf16.msra.mxu0 0
        %1133 = vmatprep.subr.bf16.mxu0 0
        %1134 = vmatpush1.bf16.msra.mxu0 0
        %1135 = vmatprep.subr.bf16.mxu0 0
        %1136 = vmatpush1.bf16.msra.mxu0 0
        %1137 = vmatprep.subr.bf16.mxu0 0
        %1138 = vmatpush1.bf16.msra.mxu0 0
        %1139 = vmatprep.subr.bf16.mxu0 0
        %1140 = vmatpush1.bf16.msra.mxu0 0
        %1141 = vmatprep.subr.bf16.mxu0 0
        %1142 = vmatpush1.bf16.msra.mxu0 0
        %1143 = vmatprep.subr.bf16.mxu0 0
        %1144 = vmatpush1.bf16.msra.mxu0 0
        %1145 = vmatprep.mubr.bf16.mxu0 0
        %1146 = vmatmul.mubr.bf16.gmra.mrb[0].mxu0 %v1111
        %v1147 = vpop.f32.mrb[0].mxu0
        %v1148 = vadd.f32 %v1096, %v1147
        %v1149 = vpop.f32.mrb[0].mxu0
        %v1150 = vpop.f32.mrb[0].mxu0
        %v1151 = vadd.f32 %v1096, %v1150
        %v1152 = vpop.f32.mrb[0].mxu0
        %1153 = vdwg.mxu0
        %v1154 = vadd.f32 %v470, %v1148
        %v1155 = vadd.f32 %v471, %v1151
        %v1156 = vld [vmem:[%s5] sm:$0x1]
        %v1157 = vld [vmem:[%s6] sm:$0x1]
        %v1158 = vsel %vm496, %v1154, 0.0
        %1159 = vadd.xlane.f32.xlu0 %v1158
        %v1160 = vpop.xlane.xlu0 %1159
        %v1161 = vsel %vm496, %v1155, 0.0
        %1162 = vadd.xlane.f32.xlu0 %v1161
        %v1163 = vpop.xlane.xlu0 %1162
        %v1164 = vrcp.pop 32.0
        %v1165 = vmul.f32 %v1160, %v1164
        %v1166 = vmul.f32 %v1163, %v1164
        %v1167 = vsub.f32 %v1154, %v1165
        %v1168 = vsub.f32 %v1155, %v1166
        %v1169 = vmul.f32 %v1167, %v1167
        %v1170 = vmul.f32 %v1168, %v1168
        %v1171 = vsel %vm496, %v1169, 0.0
        %1172 = vadd.xlane.f32.xlu0 %v1171
        %v1173 = vpop.xlane.xlu0 %1172
        %v1174 = vsel %vm496, %v1170, 0.0
        %1175 = vadd.xlane.f32.xlu0 %v1174
        %v1176 = vpop.xlane.xlu0 %1175
        %v1177 = vmul.f32 %v1173, %v1164
        %v1178 = vmul.f32 %v1176, %v1164
        %v1179 = vadd.f32 %v1177, 1e-05
        %v1180 = vadd.f32 %v1178, 1e-05
        %v1181 = vrsqrt.pop %v1179
        %v1182 = vrsqrt.pop %v1180
        %v1183 = vmul.f32 %v1167, %v1181
        %v1184 = vmul.f32 %v1168, %v1182
        %v1186 = vlaneseq
        %v1187 = vshrl.u32 %v1186, 7
        %v1188 = vsub.s32 0, %v1187
        %v1189 = vrot.slane %v1156, %v1188
        %v1191 = vmul.f32 %v1183, %v1189
        %v1192 = vmul.f32 %v1184, %v1189
        %v1194 = vlaneseq
        %v1195 = vshrl.u32 %v1194, 7
        %v1196 = vsub.s32 0, %v1195
        %v1197 = vrot.slane %v1157, %v1196
        %v1199 = vadd.f32 %v1191, %v1197
        %v1200 = vadd.f32 %v1192, %v1197
        %v1201 = vpack.c.bf16 %v1200, %v1199
        %v1202 = vld [vmem:[#allocation5] sm:$0xf]
        %v1203 = vld [vmem:[#allocation5 + $0x4] sm:$0xf]
        %v1204 = vld [vmem:[#allocation5 + $0x8] sm:$0xf]
        %v1205 = vld [vmem:[#allocation5 + $0xc] sm:$0xf]
        %v1206 = vld [vmem:[%s8] sm:$0x1]
        %v1208 = vlaneseq
        %v1209 = vshrl.u32 %v1208, 7
        %v1210 = vsub.s32 0, %v1209
        %v1211 = vrot.slane %v1206, %v1210
        %v1217 = vunpack.c.l.b16 %v1202
        %v1218 = vunpack.c.l.b16 %v1203
        %v1219 = vunpack.c.l.b16 %v1204
        %v1220 = vunpack.c.l.b16 %v1205
        %v1221 = vpack.c.b16 %v1218, %v1217
        %v1222 = vpack.c.b16 %v1220, %v1219
        %v1226 = vsel %vm496, %v1201, 0
        %1228 = vmatprep.subr.bf16.mxu0 0
        %1229 = vmatpush1.bf16.msra.mxu0 %v1221
        %1230 = vmatprep.subr.bf16.mxu0 0
        %1231 = vmatpush1.bf16.msra.mxu0 %v1222
        %1232 = vmatprep.subr.bf16.mxu0 0
        %1233 = vmatpush1.bf16.msra.mxu0 0
        %1234 = vmatprep.subr.bf16.mxu0 0
        %1235 = vmatpush1.bf16.msra.mxu0 0
        %1236 = vmatprep.subr.bf16.mxu0 0
        %1237 = vmatpush1.bf16.msra.mxu0 0
        %1238 = vmatprep.subr.bf16.mxu0 0
        %1239 = vmatpush1.bf16.msra.mxu0 0
        %1240 = vmatprep.subr.bf16.mxu0 0
        %1241 = vmatpush1.bf16.msra.mxu0 0
        %1242 = vmatprep.subr.bf16.mxu0 0
        %1243 = vmatpush1.bf16.msra.mxu0 0
        %1244 = vmatprep.subr.bf16.mxu0 0
        %1245 = vmatpush1.bf16.msra.mxu0 0
        %1246 = vmatprep.subr.bf16.mxu0 0
        %1247 = vmatpush1.bf16.msra.mxu0 0
        %1248 = vmatprep.subr.bf16.mxu0 0
        %1249 = vmatpush1.bf16.msra.mxu0 0
        %1250 = vmatprep.subr.bf16.mxu0 0
        %1251 = vmatpush1.bf16.msra.mxu0 0
        %1252 = vmatprep.subr.bf16.mxu0 0
        %1253 = vmatpush1.bf16.msra.mxu0 0
        %1254 = vmatprep.subr.bf16.mxu0 0
        %1255 = vmatpush1.bf16.msra.mxu0 0
        %1256 = vmatprep.subr.bf16.mxu0 0
        %1257 = vmatpush1.bf16.msra.mxu0 0
        %1258 = vmatprep.subr.bf16.mxu0 0
        %1259 = vmatpush1.bf16.msra.mxu0 0
        %1260 = vmatprep.mubr.bf16.mxu0 0
        %1261 = vmatmul.mubr.bf16.gmra.mrb[0].mxu0 %v1226
        %v1262 = vpop.f32.mrb[0].mxu0
        %v1263 = vadd.f32 %v1211, %v1262
        %v1264 = vpop.f32.mrb[0].mxu0
        %v1265 = vpop.f32.mrb[0].mxu0
        %v1266 = vadd.f32 %v1211, %v1265
        %v1267 = vpop.f32.mrb[0].mxu0
        %1268 = vdwg.mxu0
        %v1269 = vmul.f32 %v1263, 0.5
        %v1270 = vmul.f32 %v1266, 0.5
        %v1271 = vmul.f32 %v1263, 0.70710677
        %v1272 = vmul.f32 %v1266, 0.70710677
        %v1273 = verf.f32.pop %v1271
        %v1274 = verf.f32.pop %v1272
        %v1275 = vadd.f32 %v1273, 1.0
        %v1276 = vadd.f32 %v1274, 1.0
        %v1277 = vmul.f32 %v1269, %v1275
        %v1278 = vmul.f32 %v1270, %v1276
        %v1279 = vpack.c.bf16 %v1278, %v1277
        %v1280 = vld [vmem:[%s9] sm:$0xf]
        %v1281 = vld [vmem:[%s9 + $0x4] sm:$0xf]
        %v1282 = vld [vmem:[%s9 + $0x8] sm:$0xf]
        %v1283 = vld [vmem:[%s9 + $0xc] sm:$0xf]
        %v1284 = vld [vmem:[%s9 + $0x10] sm:$0xf]
        %v1285 = vld [vmem:[%s9 + $0x14] sm:$0xf]
        %v1286 = vld [vmem:[%s9 + $0x18] sm:$0xf]
        %v1287 = vld [vmem:[%s9 + $0x1c] sm:$0xf]
        %v1288 = vld [vmem:[%s10] sm:$0x1]
        %v1290 = vlaneseq
        %v1291 = vshrl.u32 %v1290, 7
        %v1292 = vsub.s32 0, %v1291
        %v1293 = vrot.slane %v1288, %v1292
        %v1303 = vunpack.c.l.b16 %v1280
        %v1304 = vunpack.c.l.b16 %v1281
        %v1305 = vunpack.c.l.b16 %v1282
        %v1306 = vunpack.c.l.b16 %v1283
        %v1307 = vunpack.c.l.b16 %v1284
        %v1308 = vunpack.c.l.b16 %v1285
        %v1309 = vunpack.c.l.b16 %v1286
        %v1310 = vunpack.c.l.b16 %v1287
        %v1311 = vpack.c.b16 %v1304, %v1303
        %v1312 = vpack.c.b16 %v1306, %v1305
        %v1313 = vpack.c.b16 %v1308, %v1307
        %v1314 = vpack.c.b16 %v1310, %v1309
        %vm1319 = vcmask 523264
        %v1321 = vsel %vm1319, %v1279, 0
        %1323 = vmatprep.subr.bf16.mxu0 0
        %1324 = vmatpush1.bf16.msra.mxu0 %v1311
        %1325 = vmatprep.subr.bf16.mxu0 0
        %1326 = vmatpush1.bf16.msra.mxu0 %v1312
        %1327 = vmatprep.subr.bf16.mxu0 0
        %1328 = vmatpush1.bf16.msra.mxu0 %v1313
        %1329 = vmatprep.subr.bf16.mxu0 0
        %1330 = vmatpush1.bf16.msra.mxu0 %v1314
        %1331 = vmatprep.subr.bf16.mxu0 0
        %1332 = vmatpush1.bf16.msra.mxu0 0
        %1333 = vmatprep.subr.bf16.mxu0 0
        %1334 = vmatpush1.bf16.msra.mxu0 0
        %1335 = vmatprep.subr.bf16.mxu0 0
        %1336 = vmatpush1.bf16.msra.mxu0 0
        %1337 = vmatprep.subr.bf16.mxu0 0
        %1338 = vmatpush1.bf16.msra.mxu0 0
        %1339 = vmatprep.subr.bf16.mxu0 0
        %1340 = vmatpush1.bf16.msra.mxu0 0
        %1341 = vmatprep.subr.bf16.mxu0 0
        %1342 = vmatpush1.bf16.msra.mxu0 0
        %1343 = vmatprep.subr.bf16.mxu0 0
        %1344 = vmatpush1.bf16.msra.mxu0 0
        %1345 = vmatprep.subr.bf16.mxu0 0
        %1346 = vmatpush1.bf16.msra.mxu0 0
        %1347 = vmatprep.subr.bf16.mxu0 0
        %1348 = vmatpush1.bf16.msra.mxu0 0
        %1349 = vmatprep.subr.bf16.mxu0 0
        %1350 = vmatpush1.bf16.msra.mxu0 0
        %1351 = vmatprep.subr.bf16.mxu0 0
        %1352 = vmatpush1.bf16.msra.mxu0 0
        %1353 = vmatprep.subr.bf16.mxu0 0
        %1354 = vmatpush1.bf16.msra.mxu0 0
        %1355 = vmatprep.mubr.bf16.mxu0 0
        %1356 = vmatmul.mubr.bf16.gmra.mrb[0].mxu0 %v1321
        %v1357 = vpop.f32.mrb[0].mxu0
        %v1358 = vadd.f32 %v1293, %v1357
        %v1359 = vpop.f32.mrb[0].mxu0
        %v1360 = vpop.f32.mrb[0].mxu0
        %v1361 = vadd.f32 %v1293, %v1360
        %v1362 = vpop.f32.mrb[0].mxu0
        %1363 = vdwg.mxu0
        %v1364 = vadd.f32 %v1199, %v1358
        %v1365 = vadd.f32 %v1200, %v1361
        %v1366 = vld [vmem:[%s11] sm:$0x1]
        %v1367 = vld [vmem:[%s12] sm:$0x1]
        %v1368 = vsel %vm496, %v1364, 0.0
        %1369 = vadd.xlane.f32.xlu0 %v1368
        %v1370 = vpop.xlane.xlu0 %1369
        %v1371 = vsel %vm496, %v1365, 0.0
        %1372 = vadd.xlane.f32.xlu0 %v1371
        %v1373 = vpop.xlane.xlu0 %1372
        %v1374 = vmul.f32 %v1370, %v1164
        %v1375 = vmul.f32 %v1373, %v1164
        %v1376 = vsub.f32 %v1364, %v1374
        %v1377 = vsub.f32 %v1365, %v1375
        %v1378 = vmul.f32 %v1376, %v1376
        %v1379 = vmul.f32 %v1377, %v1377
        %v1380 = vsel %vm496, %v1378, 0.0
        %1381 = vadd.xlane.f32.xlu0 %v1380
        %v1382 = vpop.xlane.xlu0 %1381
        %v1383 = vsel %vm496, %v1379, 0.0
        %1384 = vadd.xlane.f32.xlu0 %v1383
        %v1385 = vpop.xlane.xlu0 %1384
        %v1386 = vmul.f32 %v1382, %v1164
        %v1387 = vmul.f32 %v1385, %v1164
        %v1388 = vadd.f32 %v1386, 1e-05
        %v1389 = vadd.f32 %v1387, 1e-05
        %v1390 = vrsqrt.pop %v1388
        %v1391 = vrsqrt.pop %v1389
        %v1392 = vmul.f32 %v1376, %v1390
        %v1393 = vmul.f32 %v1377, %v1391
        %v1395 = vlaneseq
        %v1396 = vshrl.u32 %v1395, 7
        %v1397 = vsub.s32 0, %v1396
        %v1398 = vrot.slane %v1366, %v1397
        %v1400 = vmul.f32 %v1392, %v1398
        %v1401 = vmul.f32 %v1393, %v1398
        %v1403 = vlaneseq
        %v1404 = vshrl.u32 %v1403, 7
        %v1405 = vsub.s32 0, %v1404
        %v1406 = vrot.slane %v1367, %v1405
        %v1408 = vadd.f32 %v1400, %v1406
        %v1409 = vadd.f32 %v1401, %v1406
        %1410 = vst.msk [vmem:[%s463] sm:$0xff] %vm496, %v1408
        %1411 = vst.msk [vmem:[%s463 + $0x8] sm:$0xff] %vm496, %v1409
        %s1412 = sand.u32 %s315, 1
        %s1413 = scalar_lea.sflag [#allocation4], %s1412
        %s1414 = sand.u32 %s315, 1
        %s1415 = smul.addr %s1414, 16
        %s1416 = scalar_lea.vmem [#allocation7], %s1415
        // Predicated region
        $region81: #{tpu_custom_call.1} parent=71 // pred_check
          %p1417 = pneg %p325
        $region82: #{tpu_custom_call.1} parent=71 // pred_check_branch
          %1419 = sbr.rel (%p1417) target = $region84
        $region83: #{tpu_custom_call.1} parent=71 // pred_region
          %s1421 = ssub.s32 256, 256
          %1422 = vsyncadd %s1413, %s1421
          %s1423 = smul.addr %s29, 2
          %s1424 = smul.addr %s1423, 128
          %s1425 = scalar_lea.hbm %s13, %s1424
          %s1426 = sshll.u32 %s1416, 4
          %s1427 = int_to_ptr.vmem [resolvable:$true] %s1426
          %1432 = dma.vmem_to_hbm [thread:$0]  %s1427, 256, %s1425, %s1413, 128, 128, 8
        $region84: #{tpu_custom_call.1} parent=71 // pred_fallthru
          _
      $region72: #{tpu_custom_call.1} parent=5 // pred_fallthru
        _
      %p1433 = scmp.le.s32.totalorder 2, %s24
      // Predicated region
      $region85: #{tpu_custom_call.1} parent=5 // pred_check
        %p1434 = pneg %p1433
      $region86: #{tpu_custom_call.1} parent=5 // pred_check_branch
        %1436 = sbr.rel (%p1434) target = $region88
      $region87: #{tpu_custom_call.1} parent=5 // pred_region
        %s1437 = ssub.s32 %s24, 2
        // Predicated region
        $region89: #{tpu_custom_call.1} parent=87 // pred_check
          %p1438 = pneg %p331
        $region90: #{tpu_custom_call.1} parent=87 // pred_check_branch
          %1440 = sbr.rel (%p1438) target = $region92
        $region91: #{tpu_custom_call.1} parent=87 // pred_region
          %s1441 = sand.u32 %s316, 1
          %s1442 = scalar_lea.sflag [#allocation4], %s1441
          %s1443 = sand.u32 %s316, 1
          %s1444 = smul.addr %s1443, 16
          %s1445 = scalar_lea.vmem [#allocation7], %s1444
          %1446 = dma.done %s1442, 256
        $region92: #{tpu_custom_call.1} parent=87 // pred_fallthru
          _
      $region88: #{tpu_custom_call.1} parent=5 // pred_fallthru
        _
    $region6: #{tpu_custom_call.1} parent=1 // loop_footer
      %s28 = sadd.s32 1, %s24
    $region7: #{tpu_custom_call.1} parent=1 // loop_footer_branch
      %23 = sbr.rel target = $region3
    $region8: #{tpu_custom_call.1} parent=1 // loop_exit
      _
    %1447 = vsyncpa [#allocation3], 1
    %s1448 = scalar_lea.sflag [#allocation3], 1
    %1449 = vsyncpa %s1448, 1
    %1450 = vsyncpa [#allocation6], 1
    %1451 = vsyncpa [#allocation4], 1
    %s1452 = scalar_lea.sflag [#allocation4], 1
    %1453 = vsyncpa %s1452, 1

</llo_original>
